<compile_context>
chip_gen: v6e
topology: v6e:2x2x1
jax: 0.10.0
libtpu: 0.0.40
codegen_flags: <defaults>
</compile_context>

<pallas_src>
import jax
import jax.numpy as jnp
from jax import lax
from jax.experimental import pallas as pl
from jax.experimental.pallas import tpu as pltpu

FEATHER_SIZE = 32      # F (input feature size)
COMPUTE_SIZE = 128     # C (cc takes cat([p21, p31]) -> 256 = 2*C)
NUM_CLASSES = 2        # Classifier(8) -> Linear(8, NUM_CLASSES) + softmax
OUT_LANES = 128        # lane-dense output slab; wrapper slices [:, :NUM_CLASSES]
MASK_FILL = -1e9       # plain Python float: embedded literal, NOT a captured jnp const


# ----------------------------------------------------------------------------
# Shared math (used inside the Pallas kernel and by the same-math JAX reference)
# ----------------------------------------------------------------------------
def _reciprocal(x, in_kernel):
    if in_kernel:
        return pl.reciprocal(x, approx=True)   # EUP slot; off the VPU critical path
    return 1.0 / x


def _pool(q_eff, d_bf16, size, *, in_kernel):
    """Masked softmax pooling of candidate rows (K/V projections already removed).

    q_eff: [TB, F] f32   d_bf16: [TB, N, F] bf16   size: [TB, 1] int32
    returns pooled rows: [TB, F] f32
    """
    d = d_bf16.astype(jnp.float32)                 # one upcast; VPU math stays f32
    TB, N, _ = d.shape
    scores = jnp.sum(q_eff[:, None, :] * d, axis=-1)              # [TB, N]
    idx = lax.broadcasted_iota(jnp.int32, (TB, N), 1)
    mask = idx < size                                             # [TB, N]
    masked = jnp.where(mask, scores, MASK_FILL)
    m = jnp.max(masked, axis=-1, keepdims=True)
    p = jnp.where(mask, jnp.exp(masked - m), 0.0)
    denom = jnp.sum(p, axis=-1, keepdims=True)
    denom = jnp.where(size > 0, denom, 1.0)        # size==0 / padded rows -> no inf*0
    attn = p * _reciprocal(denom, in_kernel)                      # [TB, N]
    return jnp.sum(attn[:, :, None] * d, axis=1)                  # [TB, F]


def _forward_body(d1, d2, s2, d3, s3,
                  m_cat, v_cat, vwd, vbd, w1, b1, w2, b2, *, in_kernel):
    """Full fused forward: returns padded logits [TB, OUT_LANES] f32."""
    F = d1.shape[-1]
    # Both attentions' Q/K folded weights concatenated -> one tiny MXU call.
    q_all = jnp.dot(d1, m_cat, preferred_element_type=jnp.float32) + v_cat   # [TB, 2F]
    pooled = jnp.concatenate(
        [_pool(q_all[:, :F], d2, s2, in_kernel=in_kernel),
         _pool(q_all[:, F:], d3, s3, in_kernel=in_kernel)], axis=-1)         # [TB, 2F]
    # Block-diag V projection (after pooling) == cat(p21, p31) == cc input.
    p = jnp.dot(pooled.astype(jnp.bfloat16), vwd,
                preferred_element_type=jnp.float32) + vbd                    # [TB, 256]
    h = jnp.dot(jnp.maximum(p, 0.0).astype(jnp.bfloat16), w1,
                preferred_element_type=jnp.float32) + b1                     # [TB, 128]
    return jnp.dot(jnp.maximum(h, 0.0).astype(jnp.bfloat16), w2,
                   preferred_element_type=jnp.float32) + b2                  # [TB, OUT_LANES]


# ----------------------------------------------------------------------------
# Pallas kernel: whole forward pass in VMEM (all operands are small)
# ----------------------------------------------------------------------------
def transform_kernel(d1_ref, d2_ref, s2_ref, d3_ref, s3_ref,
                     m_ref, v_ref, vwd_ref, vbd_ref, w1_ref, b1_ref, w2_ref, b2_ref,
                     out_ref):
    logits = _forward_body(d1_ref[...], d2_ref[...], s2_ref[...],
                           d3_ref[...], s3_ref[...],
                           m_ref[...], v_ref[...], vwd_ref[...], vbd_ref[...],
                           w1_ref[...], b1_ref[...], w2_ref[...], b2_ref[...],
                           in_kernel=True)
    out_ref[...] = logits.astype(out_ref.dtype)    # bf16 lane-dense logits slab


def _pick_tb(batch, n_rows):
    """Batch-tile rows per grid step.

    Large enough to amortize the ~0.35us/step overhead, small enough that
    (a) the grid has >= ~8 steps (pipeline depth; lets v7x megacore shard the
        parallel batch axis), and
    (b) double-buffered input blocks + f32 broadcast temporaries stay within a
        ~24 MiB VMEM budget (safe on v7x's 64 MiB part; vmem_limit is 48 MiB).
    """
    if batch <= 8:
        return batch
    bytes_per_row = n_rows * FEATHER_SIZE * (2 * 2 + 2 * 4) + 4 * 1024
    vmem_cap = max(8, ((24 << 20) // bytes_per_row) & ~7)
    depth_cap = max(8, (batch // 8) & ~7)
    return int(min(vmem_cap, depth_cap, (batch + 7) & ~7))


def transform_forward(data1, data2, data2_size, data3, data3_size, prepared):
    B, F = data1.shape
    N2 = data2.shape[1]
    N3 = data3.shape[1]

    # bf16 inputs: halves the dominant HBM->VMEM DMA (data2/data3).
    d1 = data1.astype(jnp.bfloat16)
    d2 = data2.astype(jnp.bfloat16)
    d3 = data3.astype(jnp.bfloat16)
    s2 = data2_size.reshape(B, 1).astype(jnp.int32)
    s3 = data3_size.reshape(B, 1).astype(jnp.int32)

    TB = _pick_tb(B, N2 + N3)
    Bp = pl.cdiv(B, TB) * TB
    if Bp != B:                                    # pad batch to a whole tile count
        pad = Bp - B
        d1 = jnp.pad(d1, ((0, pad), (0, 0)))
        d2 = jnp.pad(d2, ((0, pad), (0, 0), (0, 0)))
        d3 = jnp.pad(d3, ((0, pad), (0, 0), (0, 0)))
        s2 = jnp.pad(s2, ((0, pad), (0, 0)))       # size==0 rows are guarded
        s3 = jnp.pad(s3, ((0, pad), (0, 0)))

    in_specs = [
        pl.BlockSpec((TB, F), lambda b: (b, 0)),
        pl.BlockSpec((TB, N2, F), lambda b: (b, 0, 0)),
        pl.BlockSpec((TB, 1), lambda b: (b, 0)),
        pl.BlockSpec((TB, N3, F), lambda b: (b, 0, 0)),
        pl.BlockSpec((TB, 1), lambda b: (b, 0)),
    ] + [pl.BlockSpec(p.shape, lambda b: (0, 0)) for p in prepared]   # params: 2-D, resident

    logits_pad = pl.pallas_call(
        transform_kernel,
        out_shape=jax.ShapeDtypeStruct((Bp, OUT_LANES), jnp.bfloat16),
        grid=(Bp // TB,),
        in_specs=in_specs,
        out_specs=pl.BlockSpec((TB, OUT_LANES), lambda b: (b, 0)),
        compiler_params=pltpu.CompilerParams(
            dimension_semantics=("parallel",),
            vmem_limit_bytes=48 * 1024 * 1024),
    )(d1, d2, s2, d3, s3, *prepared)

    # Tiny 2-class softmax in the wrapper (98% of the padded-lane exp/max/sum
    # inside the kernel was padding work).
    logits = logits_pad[:B, :NUM_CLASSES].astype(jnp.float32)
    return jax.nn.softmax(logits, axis=-1)


# ----------------------------------------------------------------------------
# Parameter folding / packing (done once, outside the kernel)
# ----------------------------------------------------------------------------
def prepare_params(raw):
    (a11_qw, a11_qb, a11_kw, a11_kb, a11_vw, a11_vb,
     a12_qw, a12_qb, a12_kw, a12_kb, a12_vw, a12_vb,
     cc_w1, cc_b1, cc_w2, cc_b2, cls_w, cls_b) = raw
    scale = 1.0 / jnp.sqrt(jnp.float32(COMPUTE_SIZE))
    F = FEATHER_SIZE

    # K projection folded into the query side (softmax shift-invariance drops
    # the per-row constant terms); both attentions packed side by side.
    m11 = (a11_qw @ a11_kw.T) * scale              # [F, F]
    m12 = (a12_qw @ a12_kw.T) * scale
    v11 = (a11_qb @ a11_kw.T) * scale              # [1, F]
    v12 = (a12_qb @ a12_kw.T) * scale
    m_cat = jnp.concatenate([m11, m12], axis=1).astype(jnp.bfloat16)   # [F, 2F]
    v_cat = jnp.concatenate([v11, v12], axis=1).astype(jnp.float32)    # [1, 2F]

    # Block-diag V projection: cat(pooled21,pooled31) @ vwd + vbd == cat(p21,p31).
    vwd = jnp.zeros((2 * F, 2 * COMPUTE_SIZE), jnp.float32)
    vwd = vwd.at[:F, :COMPUTE_SIZE].set(a11_vw)
    vwd = vwd.at[F:, COMPUTE_SIZE:].set(a12_vw)
    vwd = vwd.astype(jnp.bfloat16)                                     # [2F, 256]
    vbd = jnp.concatenate([a11_vb, a12_vb], axis=1).astype(jnp.float32)  # [1, 256]

    w1 = cc_w1.astype(jnp.bfloat16)                # [256, 128]
    b1 = cc_b1.astype(jnp.float32)                 # [1, 128]

    # Fold cc second linear with the Classifier linear; zero-pad to lane-dense
    # output (softmax is done in the wrapper on the real lanes only).
    w2 = cc_w2 @ cls_w                             # [128, NUM_CLASSES]
    b2 = cc_b2 @ cls_w + cls_b                     # [1, NUM_CLASSES]
    hidden = cc_w2.shape[0]
    w2_pad = jnp.zeros((hidden, OUT_LANES), jnp.float32).at[:, :NUM_CLASSES].set(w2)
    b2_pad = jnp.zeros((1, OUT_LANES), jnp.float32).at[:, :NUM_CLASSES].set(b2)

    return (m_cat, v_cat, vwd, vbd, w1, b1, w2_pad.astype(jnp.bfloat16), b2_pad)


# ----------------------------------------------------------------------------
# References
# ----------------------------------------------------------------------------
def reference_same_math(data1, data2, data2_size, data3, data3_size, prepared):
    """Same math as the kernel, in plain JAX (catches lowering bugs)."""
    B = data1.shape[0]
    d1 = data1.astype(jnp.bfloat16)
    d2 = data2.astype(jnp.bfloat16)
    d3 = data3.astype(jnp.bfloat16)
    s2 = data2_size.reshape(B, 1).astype(jnp.int32)
    s3 = data3_size.reshape(B, 1).astype(jnp.int32)
    logits = _forward_body(d1, d2, s2, d3, s3, *prepared, in_kernel=False)
    logits = logits.astype(jnp.bfloat16).astype(jnp.float32)[:, :NUM_CLASSES]
    return jax.nn.softmax(logits, axis=-1)


def reference_original(data1, data2, data2_size, data3, data3_size, raw):
    """Original f32 formulation (Q/K/V, masked softmax, attn@V, cc, classifier)."""
    (a11_qw, a11_qb, a11_kw, a11_kb, a11_vw, a11_vb,
     a12_qw, a12_qb, a12_kw, a12_kb, a12_vw, a12_vb,
     cc_w1, cc_b1, cc_w2, cc_b2, cls_w, cls_b) = raw
    B, F = data1.shape

    def attn(q, d, size, qw, qb, kw, kb, vw, vb):
        N = d.shape[1]
        C = qw.shape[1]
        d_flat = d.reshape(B * N, F)
        Q = q @ qw + qb
        K = (d_flat @ kw + kb).reshape(B, N, C)
        V = (d_flat @ vw + vb).reshape(B, N, C)
        scores = jnp.einsum("bc,bnc->bn", Q, K) / jnp.sqrt(jnp.float32(C))
        idx = lax.broadcasted_iota(jnp.int32, (B, N), 1)
        mask = idx < size.reshape(B, 1).astype(jnp.int32)
        masked = jnp.where(mask, scores, MASK_FILL)
        m = jnp.max(masked, axis=-1, keepdims=True)
        p = jnp.where(mask, jnp.exp(masked - m), 0.0)
        w = p / jnp.sum(p, axis=-1, keepdims=True)
        return jnp.einsum("bn,bnc->bc", w, V)

    p21 = attn(data1, data2, data2_size, a11_qw, a11_qb, a11_kw, a11_kb, a11_vw, a11_vb)
    p31 = attn(data1, data3, data3_size, a12_qw, a12_qb, a12_kw, a12_kb, a12_vw, a12_vb)
    operate = jnp.concatenate([p21, p31], axis=1)
    h = jnp.maximum(operate, 0.0) @ cc_w1 + cc_b1
    feat8 = jnp.maximum(h, 0.0) @ cc_w2 + cc_b2
    logits = feat8 @ cls_w + cls_b
    return jax.nn.softmax(logits, axis=-1)


# ----------------------------------------------------------------------------
# Deterministic parameter init (PyTorch nn.Linear-style uniform fan-in init)
# ----------------------------------------------------------------------------
def _dense(key, fan_in, fan_out):
    kw, kb = jax.random.split(key)
    lim = 1.0 / jnp.sqrt(jnp.float32(fan_in))
    w = jax.random.uniform(kw, (fan_in, fan_out), jnp.float32, -lim, lim)
    b = jax.random.uniform(kb, (1, fan_out), jnp.float32, -lim, lim)
    return w, b


def init_params(key):
    keys = jax.random.split(key, 10)
    a11_qw, a11_qb = _dense(keys[0], FEATHER_SIZE, COMPUTE_SIZE)
    a11_kw, a11_kb = _dense(keys[1], FEATHER_SIZE, COMPUTE_SIZE)
    a11_vw, a11_vb = _dense(keys[2], FEATHER_SIZE, COMPUTE_SIZE)
    a12_qw, a12_qb = _dense(keys[3], FEATHER_SIZE, COMPUTE_SIZE)
    a12_kw, a12_kb = _dense(keys[4], FEATHER_SIZE, COMPUTE_SIZE)
    a12_vw, a12_vb = _dense(keys[5], FEATHER_SIZE, COMPUTE_SIZE)
    cc_w1, cc_b1 = _dense(keys[6], 2 * COMPUTE_SIZE, 128)
    cc_w2, cc_b2 = _dense(keys[7], 128, 8)
    cls_w, cls_b = _dense(keys[8], 8, NUM_CLASSES)
    return (a11_qw, a11_qb, a11_kw, a11_kb, a11_vw, a11_vb,
            a12_qw, a12_qb, a12_kw, a12_kb, a12_vw, a12_vb,
            cc_w1, cc_b1, cc_w2, cc_b2, cls_w, cls_b)


if __name__ == "__main__":
    key = jax.random.PRNGKey(0)
    kd1, kd2, kd3, ks2, ks3, kp = jax.random.split(key, 6)

    # Small demo shapes; B=64 so the batch grid has 8 pipelined "parallel" steps.
    B, N2, N3 = 64, 8, 8
    data1 = jax.random.normal(kd1, (B, FEATHER_SIZE), jnp.float32)
    data2 = jax.random.normal(kd2, (B, N2, FEATHER_SIZE), jnp.float32)
    data3 = jax.random.normal(kd3, (B, N3, FEATHER_SIZE), jnp.float32)
    data2_size = jax.random.randint(ks2, (B,), 1, N2 + 1)
    data3_size = jax.random.randint(ks3, (B,), 1, N3 + 1)

    raw = init_params(kp)
    prepared = prepare_params(raw)

    out = transform_forward(data1, data2, data2_size, data3, data3_size, prepared)
    out = jax.block_until_ready(out)
    assert out.shape == (B, NUM_CLASSES), out.shape
    assert bool(jnp.all(jnp.isfinite(out)))

    # 1) Tight check vs. a pure-JAX mirror of the kernel math (catches lowering
    #    bugs; slack covers approx-reciprocal + reduction-order + bf16-logit ulp).
    ref_fast = jax.block_until_ready(
        reference_same_math(data1, data2, data2_size, data3, data3_size, prepared))
    assert jnp.allclose(out, ref_fast, atol=5e-3, rtol=5e-3), (out, ref_fast)

    # 2) Semantics check vs. the original f32 Q/K/V formulation (catches algebra
    #    bugs; looser tolerance covers bf16 inputs/weights + folded-weight rounding).
    ref_orig = jax.block_until_ready(
        reference_original(data1, data2, data2_size, data3, data3_size, raw))
    assert jnp.allclose(out, ref_orig, atol=5e-2, rtol=5e-2), (out, ref_orig)

    print("KERNEL_OK")
</pallas_src>

<mosaic_0001>
module attributes {stable_mosaic.version = 11 : i64} {
  func.func @transform_kernel(%arg0: i32, %arg1: memref<8x32xbf16, #tpu.memory_space<vmem>>, %arg2: memref<8x8x32xbf16, #tpu.memory_space<vmem>>, %arg3: memref<8x1xi32, #tpu.memory_space<vmem>>, %arg4: memref<8x8x32xbf16, #tpu.memory_space<vmem>>, %arg5: memref<8x1xi32, #tpu.memory_space<vmem>>, %arg6: memref<32x64xbf16, #tpu.memory_space<vmem>>, %arg7: memref<1x64xf32, #tpu.memory_space<vmem>>, %arg8: memref<64x256xbf16, #tpu.memory_space<vmem>>, %arg9: memref<1x256xf32, #tpu.memory_space<vmem>>, %arg10: memref<256x128xbf16, #tpu.memory_space<vmem>>, %arg11: memref<1x128xf32, #tpu.memory_space<vmem>>, %arg12: memref<128x128xbf16, #tpu.memory_space<vmem>>, %arg13: memref<1x128xf32, #tpu.memory_space<vmem>>, %arg14: memref<8x128xbf16, #tpu.memory_space<vmem>>) attributes {dimension_semantics = [#tpu.dimension_semantics<parallel>], iteration_bounds = array<i64: 8>, scalar_prefetch = 0 : i64, scratch_operands = 0 : i64, tpu.core_type = #tpu.core_type<tc>, window_params = [{transform_indices = @transform_0, window_bounds = array<i64: 8, 32>}, {transform_indices = @transform_1, window_bounds = array<i64: 8, 8, 32>}, {transform_indices = @transform_2, window_bounds = array<i64: 8, 1>}, {transform_indices = @transform_3, window_bounds = array<i64: 8, 8, 32>}, {transform_indices = @transform_4, window_bounds = array<i64: 8, 1>}, {pipeline_mode = #tpu.pipeline_mode<synchronous>, transform_indices = @transform_5, window_bounds = array<i64: 32, 64>}, {pipeline_mode = #tpu.pipeline_mode<synchronous>, transform_indices = @transform_6, window_bounds = array<i64: 1, 64>}, {pipeline_mode = #tpu.pipeline_mode<synchronous>, transform_indices = @transform_7, window_bounds = array<i64: 64, 256>}, {pipeline_mode = #tpu.pipeline_mode<synchronous>, transform_indices = @transform_8, window_bounds = array<i64: 1, 256>}, {pipeline_mode = #tpu.pipeline_mode<synchronous>, transform_indices = @transform_9, window_bounds = array<i64: 256, 128>}, {pipeline_mode = #tpu.pipeline_mode<synchronous>, transform_indices = @transform_10, window_bounds = array<i64: 1, 128>}, {pipeline_mode = #tpu.pipeline_mode<synchronous>, transform_indices = @transform_11, window_bounds = array<i64: 128, 128>}, {pipeline_mode = #tpu.pipeline_mode<synchronous>, transform_indices = @transform_12, window_bounds = array<i64: 1, 128>}, {transform_indices = @transform_13, window_bounds = array<i64: 8, 128>}]} {
    %c0 = arith.constant 0 : index
    %c0_0 = arith.constant 0 : index
    %0 = vector.load %arg1[%c0, %c0_0] : memref<8x32xbf16, #tpu.memory_space<vmem>>, vector<8x32xbf16>
    %c0_1 = arith.constant 0 : index
    %c0_2 = arith.constant 0 : index
    %c0_3 = arith.constant 0 : index
    %1 = vector.load %arg2[%c0_1, %c0_2, %c0_3] : memref<8x8x32xbf16, #tpu.memory_space<vmem>>, vector<8x8x32xbf16>
    %c0_4 = arith.constant 0 : index
    %c0_5 = arith.constant 0 : index
    %2 = vector.load %arg3[%c0_4, %c0_5] : memref<8x1xi32, #tpu.memory_space<vmem>>, vector<8x1xi32>
    %c0_6 = arith.constant 0 : index
    %c0_7 = arith.constant 0 : index
    %c0_8 = arith.constant 0 : index
    %3 = vector.load %arg4[%c0_6, %c0_7, %c0_8] : memref<8x8x32xbf16, #tpu.memory_space<vmem>>, vector<8x8x32xbf16>
    %c0_9 = arith.constant 0 : index
    %c0_10 = arith.constant 0 : index
    %4 = vector.load %arg5[%c0_9, %c0_10] : memref<8x1xi32, #tpu.memory_space<vmem>>, vector<8x1xi32>
    %c0_11 = arith.constant 0 : index
    %c0_12 = arith.constant 0 : index
    %5 = vector.load %arg6[%c0_11, %c0_12] : memref<32x64xbf16, #tpu.memory_space<vmem>>, vector<32x64xbf16>
    %c0_13 = arith.constant 0 : index
    %c0_14 = arith.constant 0 : index
    %6 = vector.load %arg7[%c0_13, %c0_14] : memref<1x64xf32, #tpu.memory_space<vmem>>, vector<1x64xf32>
    %c0_15 = arith.constant 0 : index
    %c0_16 = arith.constant 0 : index
    %7 = vector.load %arg8[%c0_15, %c0_16] : memref<64x256xbf16, #tpu.memory_space<vmem>>, vector<64x256xbf16>
    %c0_17 = arith.constant 0 : index
    %c0_18 = arith.constant 0 : index
    %8 = vector.load %arg9[%c0_17, %c0_18] : memref<1x256xf32, #tpu.memory_space<vmem>>, vector<1x256xf32>
    %c0_19 = arith.constant 0 : index
    %c0_20 = arith.constant 0 : index
    %9 = vector.load %arg10[%c0_19, %c0_20] : memref<256x128xbf16, #tpu.memory_space<vmem>>, vector<256x128xbf16>
    %c0_21 = arith.constant 0 : index
    %c0_22 = arith.constant 0 : index
    %10 = vector.load %arg11[%c0_21, %c0_22] : memref<1x128xf32, #tpu.memory_space<vmem>>, vector<1x128xf32>
    %c0_23 = arith.constant 0 : index
    %c0_24 = arith.constant 0 : index
    %11 = vector.load %arg12[%c0_23, %c0_24] : memref<128x128xbf16, #tpu.memory_space<vmem>>, vector<128x128xbf16>
    %c0_25 = arith.constant 0 : index
    %c0_26 = arith.constant 0 : index
    %12 = vector.load %arg13[%c0_25, %c0_26] : memref<1x128xf32, #tpu.memory_space<vmem>>, vector<1x128xf32>
    %cst = arith.constant dense<0.000000e+00> : vector<8x64xf32>
    %13 = tpu.matmul %0, %5, %cst {dimension_numbers = #tpu.dot_dimension_numbers<[1], [0], [0], [1], [0, 0, 1, 1], [], []>} : vector<8x32xbf16>, vector<32x64xbf16>, vector<8x64xf32> -> vector<8x64xf32>
    %14 = vector.broadcast %6 : vector<1x64xf32> to vector<8x64xf32>
    %15 = arith.addf %13, %14 : vector<8x64xf32>
    %16 = vector.extract_strided_slice %15 {offsets = [0, 0], sizes = [8, 32], strides = [1, 1]} : vector<8x64xf32> to vector<8x32xf32>
    %17 = arith.extf %1 : vector<8x8x32xbf16> to vector<8x8x32xf32>
    %18 = vector.shape_cast %16 : vector<8x32xf32> to vector<8x1x32xf32>
    %19 = vector.broadcast %18 : vector<8x1x32xf32> to vector<8x8x32xf32>
    %20 = arith.mulf %19, %17 : vector<8x8x32xf32>
    %cst_27 = arith.constant dense<0.000000e+00> : vector<8x8xf32>
    %21 = vector.multi_reduction <add>, %20, %cst_27 [2] : vector<8x8x32xf32> to vector<8x8xf32>
    %22 = tpu.iota {dimensions = array<i32: 1>} : vector<8x8xi32>
    %23 = vector.broadcast %2 : vector<8x1xi32> to vector<8x8xi32>
    %24 = arith.cmpi slt, %22, %23 : vector<8x8xi32>
    %cst_28 = arith.constant -1.000000e+09 : f32
    %25 = vector.broadcast %cst_28 : f32 to vector<8x8xf32>
    %26 = arith.select %24, %21, %25 : vector<8x8xi1>, vector<8x8xf32>
    %cst_29 = arith.constant dense<0xFF800000> : vector<8xf32>
    %27 = vector.multi_reduction <maximumf>, %26, %cst_29 [1] : vector<8x8xf32> to vector<8xf32>
    %28 = vector.shape_cast %27 : vector<8xf32> to vector<8x1xf32>
    %29 = vector.broadcast %28 : vector<8x1xf32> to vector<8x8xf32>
    %30 = arith.subf %26, %29 : vector<8x8xf32>
    %31 = math.exp %30 : vector<8x8xf32>
    %cst_30 = arith.constant 0.000000e+00 : f32
    %32 = vector.broadcast %cst_30 : f32 to vector<8x8xf32>
    %33 = arith.select %24, %31, %32 : vector<8x8xi1>, vector<8x8xf32>
    %cst_31 = arith.constant dense<0.000000e+00> : vector<8xf32>
    %34 = vector.multi_reduction <add>, %33, %cst_31 [1] : vector<8x8xf32> to vector<8xf32>
    %35 = vector.shape_cast %34 : vector<8xf32> to vector<8x1xf32>
    %c0_i32 = arith.constant 0 : i32
    %36 = vector.broadcast %c0_i32 : i32 to vector<8x1xi32>
    %37 = arith.cmpi sgt, %2, %36 : vector<8x1xi32>
    %cst_32 = arith.constant 1.000000e+00 : f32
    %38 = vector.broadcast %cst_32 : f32 to vector<8x1xf32>
    %39 = arith.select %37, %35, %38 : vector<8x1xi1>, vector<8x1xf32>
    %40 = tpu.reciprocal %39 {approx = true} : vector<8x1xf32> -> vector<8x1xf32>
    %41 = vector.broadcast %40 : vector<8x1xf32> to vector<8x8xf32>
    %42 = arith.mulf %33, %41 : vector<8x8xf32>
    %43 = vector.shape_cast %42 : vector<8x8xf32> to vector<8x8x1xf32>
    %44 = vector.broadcast %43 : vector<8x8x1xf32> to vector<8x8x32xf32>
    %45 = arith.mulf %44, %17 : vector<8x8x32xf32>
    %cst_33 = arith.constant dense<0.000000e+00> : vector<8x32xf32>
    %46 = vector.multi_reduction <add>, %45, %cst_33 [1] : vector<8x8x32xf32> to vector<8x32xf32>
    %47 = vector.extract_strided_slice %15 {offsets = [0, 32], sizes = [8, 32], strides = [1, 1]} : vector<8x64xf32> to vector<8x32xf32>
    %48 = arith.extf %3 : vector<8x8x32xbf16> to vector<8x8x32xf32>
    %49 = vector.shape_cast %47 : vector<8x32xf32> to vector<8x1x32xf32>
    %50 = vector.broadcast %49 : vector<8x1x32xf32> to vector<8x8x32xf32>
    %51 = arith.mulf %50, %48 : vector<8x8x32xf32>
    %cst_34 = arith.constant dense<0.000000e+00> : vector<8x8xf32>
    %52 = vector.multi_reduction <add>, %51, %cst_34 [2] : vector<8x8x32xf32> to vector<8x8xf32>
    %53 = tpu.iota {dimensions = array<i32: 1>} : vector<8x8xi32>
    %54 = vector.broadcast %4 : vector<8x1xi32> to vector<8x8xi32>
    %55 = arith.cmpi slt, %53, %54 : vector<8x8xi32>
    %cst_35 = arith.constant -1.000000e+09 : f32
    %56 = vector.broadcast %cst_35 : f32 to vector<8x8xf32>
    %57 = arith.select %55, %52, %56 : vector<8x8xi1>, vector<8x8xf32>
    %cst_36 = arith.constant dense<0xFF800000> : vector<8xf32>
    %58 = vector.multi_reduction <maximumf>, %57, %cst_36 [1] : vector<8x8xf32> to vector<8xf32>
    %59 = vector.shape_cast %58 : vector<8xf32> to vector<8x1xf32>
    %60 = vector.broadcast %59 : vector<8x1xf32> to vector<8x8xf32>
    %61 = arith.subf %57, %60 : vector<8x8xf32>
    %62 = math.exp %61 : vector<8x8xf32>
    %cst_37 = arith.constant 0.000000e+00 : f32
    %63 = vector.broadcast %cst_37 : f32 to vector<8x8xf32>
    %64 = arith.select %55, %62, %63 : vector<8x8xi1>, vector<8x8xf32>
    %cst_38 = arith.constant dense<0.000000e+00> : vector<8xf32>
    %65 = vector.multi_reduction <add>, %64, %cst_38 [1] : vector<8x8xf32> to vector<8xf32>
    %66 = vector.shape_cast %65 : vector<8xf32> to vector<8x1xf32>
    %c0_i32_39 = arith.constant 0 : i32
    %67 = vector.broadcast %c0_i32_39 : i32 to vector<8x1xi32>
    %68 = arith.cmpi sgt, %4, %67 : vector<8x1xi32>
    %cst_40 = arith.constant 1.000000e+00 : f32
    %69 = vector.broadcast %cst_40 : f32 to vector<8x1xf32>
    %70 = arith.select %68, %66, %69 : vector<8x1xi1>, vector<8x1xf32>
    %71 = tpu.reciprocal %70 {approx = true} : vector<8x1xf32> -> vector<8x1xf32>
    %72 = vector.broadcast %71 : vector<8x1xf32> to vector<8x8xf32>
    %73 = arith.mulf %64, %72 : vector<8x8xf32>
    %74 = vector.shape_cast %73 : vector<8x8xf32> to vector<8x8x1xf32>
    %75 = vector.broadcast %74 : vector<8x8x1xf32> to vector<8x8x32xf32>
    %76 = arith.mulf %75, %48 : vector<8x8x32xf32>
    %cst_41 = arith.constant dense<0.000000e+00> : vector<8x32xf32>
    %77 = vector.multi_reduction <add>, %76, %cst_41 [1] : vector<8x8x32xf32> to vector<8x32xf32>
    %78 = tpu.concatenate %46, %77 in 1 : vector<8x32xf32>, vector<8x32xf32> -> vector<8x64xf32>
    %79 = arith.truncf %78 : vector<8x64xf32> to vector<8x64xbf16>
    %cst_42 = arith.constant dense<0.000000e+00> : vector<8x256xf32>
    %80 = tpu.matmul %79, %7, %cst_42 {dimension_numbers = #tpu.dot_dimension_numbers<[1], [0], [0], [1], [0, 0, 1, 1], [], []>} : vector<8x64xbf16>, vector<64x256xbf16>, vector<8x256xf32> -> vector<8x256xf32>
    %81 = vector.broadcast %8 : vector<1x256xf32> to vector<8x256xf32>
    %82 = arith.addf %80, %81 : vector<8x256xf32>
    %cst_43 = arith.constant 0.000000e+00 : f32
    %83 = vector.broadcast %cst_43 : f32 to vector<8x256xf32>
    %84 = arith.maximumf %82, %83 : vector<8x256xf32>
    %85 = arith.truncf %84 : vector<8x256xf32> to vector<8x256xbf16>
    %cst_44 = arith.constant dense<0.000000e+00> : vector<8x128xf32>
    %86 = tpu.matmul %85, %9, %cst_44 {dimension_numbers = #tpu.dot_dimension_numbers<[1], [0], [0], [1], [0, 0, 1, 1], [], []>} : vector<8x256xbf16>, vector<256x128xbf16>, vector<8x128xf32> -> vector<8x128xf32>
    %87 = vector.broadcast %10 : vector<1x128xf32> to vector<8x128xf32>
    %88 = arith.addf %86, %87 : vector<8x128xf32>
    %cst_45 = arith.constant 0.000000e+00 : f32
    %89 = vector.broadcast %cst_45 : f32 to vector<8x128xf32>
    %90 = arith.maximumf %88, %89 : vector<8x128xf32>
    %91 = arith.truncf %90 : vector<8x128xf32> to vector<8x128xbf16>
    %cst_46 = arith.constant dense<0.000000e+00> : vector<8x128xf32>
    %92 = tpu.matmul %91, %11, %cst_46 {dimension_numbers = #tpu.dot_dimension_numbers<[1], [0], [0], [1], [0, 0, 1, 1], [], []>} : vector<8x128xbf16>, vector<128x128xbf16>, vector<8x128xf32> -> vector<8x128xf32>
    %93 = vector.broadcast %12 : vector<1x128xf32> to vector<8x128xf32>
    %94 = arith.addf %92, %93 : vector<8x128xf32>
    %95 = arith.truncf %94 : vector<8x128xf32> to vector<8x128xbf16>
    %c0_47 = arith.constant 0 : index
    %c0_48 = arith.constant 0 : index
    %96 = vector.load %arg14[%c0_47, %c0_48] : memref<8x128xbf16, #tpu.memory_space<vmem>>, vector<8x128xbf16>
    tpu.vector_store %arg14[%c0_47, %c0_48], %95 {strides = array<i32>} : memref<8x128xbf16, #tpu.memory_space<vmem>>, vector<8x128xbf16>,
    return
  }
  func.func @transform_0(%arg0: i32) -> (i32, i32) {
    %c0_i32 = arith.constant 0 : i32
    %c0_i32_0 = arith.constant 0 : i32
    return %arg0, %c0_i32 : i32, i32
  }
  func.func @transform_1(%arg0: i32) -> (i32, i32, i32) {
    %c0_i32 = arith.constant 0 : i32
    %c0_i32_0 = arith.constant 0 : i32
    %c0_i32_1 = arith.constant 0 : i32
    return %arg0, %c0_i32, %c0_i32_0 : i32, i32, i32
  }
  func.func @transform_2(%arg0: i32) -> (i32, i32) {
    %c0_i32 = arith.constant 0 : i32
    %c0_i32_0 = arith.constant 0 : i32
    return %arg0, %c0_i32 : i32, i32
  }
  func.func @transform_3(%arg0: i32) -> (i32, i32, i32) {
    %c0_i32 = arith.constant 0 : i32
    %c0_i32_0 = arith.constant 0 : i32
    %c0_i32_1 = arith.constant 0 : i32
    return %arg0, %c0_i32, %c0_i32_0 : i32, i32, i32
  }
  func.func @transform_4(%arg0: i32) -> (i32, i32) {
    %c0_i32 = arith.constant 0 : i32
    %c0_i32_0 = arith.constant 0 : i32
    return %arg0, %c0_i32 : i32, i32
  }
  func.func @transform_5(%arg0: i32) -> (i32, i32) {
    %c0_i32 = arith.constant 0 : i32
    %c0_i32_0 = arith.constant 0 : i32
    %c0_i32_1 = arith.constant 0 : i32
    return %c0_i32, %c0_i32_0 : i32, i32
  }
  func.func @transform_6(%arg0: i32) -> (i32, i32) {
    %c0_i32 = arith.constant 0 : i32
    %c0_i32_0 = arith.constant 0 : i32
    %c0_i32_1 = arith.constant 0 : i32
    return %c0_i32, %c0_i32_0 : i32, i32
  }
  func.func @transform_7(%arg0: i32) -> (i32, i32) {
    %c0_i32 = arith.constant 0 : i32
    %c0_i32_0 = arith.constant 0 : i32
    %c0_i32_1 = arith.constant 0 : i32
    return %c0_i32, %c0_i32_0 : i32, i32
  }
  func.func @transform_8(%arg0: i32) -> (i32, i32) {
    %c0_i32 = arith.constant 0 : i32
    %c0_i32_0 = arith.constant 0 : i32
    %c0_i32_1 = arith.constant 0 : i32
    return %c0_i32, %c0_i32_0 : i32, i32
  }
  func.func @transform_9(%arg0: i32) -> (i32, i32) {
    %c0_i32 = arith.constant 0 : i32
    %c0_i32_0 = arith.constant 0 : i32
    %c0_i32_1 = arith.constant 0 : i32
    return %c0_i32, %c0_i32_0 : i32, i32
  }
  func.func @transform_10(%arg0: i32) -> (i32, i32) {
    %c0_i32 = arith.constant 0 : i32
    %c0_i32_0 = arith.constant 0 : i32
    %c0_i32_1 = arith.constant 0 : i32
    return %c0_i32, %c0_i32_0 : i32, i32
  }
  func.func @transform_11(%arg0: i32) -> (i32, i32) {
    %c0_i32 = arith.constant 0 : i32
    %c0_i32_0 = arith.constant 0 : i32
    %c0_i32_1 = arith.constant 0 : i32
    return %c0_i32, %c0_i32_0 : i32, i32
  }
  func.func @transform_12(%arg0: i32) -> (i32, i32) {
    %c0_i32 = arith.constant 0 : i32
    %c0_i32_0 = arith.constant 0 : i32
    %c0_i32_1 = arith.constant 0 : i32
    return %c0_i32, %c0_i32_0 : i32, i32
  }
  func.func @transform_13(%arg0: i32) -> (i32, i32) {
    %c0_i32 = arith.constant 0 : i32
    %c0_i32_0 = arith.constant 0 : i32
    return %arg0, %c0_i32 : i32, i32
  }
}

</mosaic_0001>

<llo_original>
// kernel: tpu_custom_call.1
$region0: #{tpu_custom_call.1}
  #allocation0 [shape = 'u32[]', space=smem, size = 0x4, offset = 0x4, fixed_abs, tag = 'smem constant byte address 0x4 - core index']
  #allocation1 [shape = 'u32[144,128]{1,0:T(1,128)}', space=vmem, size = 0x12000, scoped, tag = 'internal scratch']
  %s0 = inlined_call_operand.vmem [shape: bf16[64,32], index: 0, kind: input, shape index: {}]
  %s1 = inlined_call_operand.vmem [shape: bf16[64,8,32], index: 1, kind: input, shape index: {}]
  %s2 = inlined_call_operand.vmem [shape: s32[64,1], index: 2, kind: input, shape index: {}]
  %s3 = inlined_call_operand.vmem [shape: bf16[64,8,32], index: 3, kind: input, shape index: {}]
  %s4 = inlined_call_operand.vmem [shape: s32[64,1], index: 4, kind: input, shape index: {}]
  %s5 = inlined_call_operand.vmem [shape: bf16[32,64], index: 5, kind: input, shape index: {}]
  %s6 = inlined_call_operand.vmem [shape: f32[1,64], index: 6, kind: input, shape index: {}]
  %s7 = inlined_call_operand.vmem [shape: bf16[64,256], index: 7, kind: input, shape index: {}]
  %s8 = inlined_call_operand.vmem [shape: f32[1,256], index: 8, kind: input, shape index: {}]
  %s9 = inlined_call_operand.vmem [shape: bf16[256,128], index: 9, kind: input, shape index: {}]
  %s10 = inlined_call_operand.vmem [shape: f32[1,128], index: 10, kind: input, shape index: {}]
  %s11 = inlined_call_operand.vmem [shape: bf16[128,128], index: 11, kind: input, shape index: {}]
  %s12 = inlined_call_operand.vmem [shape: f32[1,128], index: 12, kind: input, shape index: {}]
  %s13 = inlined_call_operand.hbm [shape: bf16[64,128], index: 13, kind: output, shape index: {}]
  %s14 = sld [smem:[#allocation0]]
  $region85: #{tpu_custom_call.1} parent=0
    _
  %s16 = ssub.s32 1, %s14
  %s17 = scalar_select 0, %s16, %s14
  $region1: #{tpu_custom_call.1} parent=0
    #allocation2 [shape = 'u8[4096]{0}', space=vmem, size = 0x1000, scoped, tag = 'output window, operand 0']
    #allocation3 [shape = 's32[2]{0}', space=sflag, size = 0x8, scoped, tag = 'scoped memory for tpu_custom_call.1']
    %18 = vsyncpa [#allocation3], 0
    %s19 = scalar_lea.sflag [#allocation3], 1
    %20 = vsyncpa %s19, 0
    loop: start=0, step=1, limit=10
    $region2: #{tpu_custom_call.1} parent=1 // loop_pre_header
      _
    $region3: #{tpu_custom_call.1} parent=1 // loop_header
      %s22 = sphi 0, %s26
      %p23 = scmp.ge.s32.totalorder %s22, 10
      %s32 = sphi 0, %s34
      %s35 = sphi 0, %s32
      %s36 = sphi 0, %s35
      %s52 = sphi 0, %s36
      %s58 = sphi 0, %s60
      %s61 = sphi 0, %s58
      %s62 = sphi 0, %s61
      %s78 = sphi 0, %s62
      %s84 = sphi 0, %s86
      %s87 = sphi 0, %s84
      %s88 = sphi 0, %s87
      %s104 = sphi 0, %s88
      %s110 = sphi 0, %s112
      %s113 = sphi 0, %s110
      %s114 = sphi 0, %s113
      %s130 = sphi 0, %s114
      %s136 = sphi 0, %s138
      %s139 = sphi 0, %s136
      %s140 = sphi 0, %s139
      %s156 = sphi 0, %s140
      %s160 = sphi 0, %s160
      %s162 = sphi 0, %s160
      %s163 = sphi 0, %s162
      %s177 = sphi 0, %s163
      %s181 = sphi 0, %s181
      %s183 = sphi 0, %s181
      %s184 = sphi 0, %s183
      %s198 = sphi 0, %s184
      %s202 = sphi 0, %s202
      %s204 = sphi 0, %s202
      %s205 = sphi 0, %s204
      %s219 = sphi 0, %s205
      %s223 = sphi 0, %s223
      %s225 = sphi 0, %s223
      %s226 = sphi 0, %s225
      %s240 = sphi 0, %s226
      %s244 = sphi 0, %s244
      %s246 = sphi 0, %s244
      %s247 = sphi 0, %s246
      %s261 = sphi 0, %s247
      %s265 = sphi 0, %s265
      %s267 = sphi 0, %s265
      %s268 = sphi 0, %s267
      %s282 = sphi 0, %s268
      %s286 = sphi 0, %s286
      %s288 = sphi 0, %s286
      %s289 = sphi 0, %s288
      %s303 = sphi 0, %s289
      %s307 = sphi 0, %s307
      %s309 = sphi 0, %s307
      %s310 = sphi 0, %s309
      %s324 = sphi 0, %s310
      %s330 = sphi 0, %s332
      %s333 = sphi 0, %s330
      %s334 = sphi 0, %s333
      %s350 = sphi 0, %s334
    $region4: #{tpu_custom_call.1} parent=1 // loop_header_branch
      %25 = sbr.rel (%p23) target = $region8
    $region5: #{tpu_custom_call.1} parent=1 // loop_body
      %s27 = ssub.s32 %s22, 1
      %s28 = ssub.s32 %s22, 2
      %s29 = sadd.s32 %s22, 1
      %s30 = ssub.s32 %s22, %s29
      %p31 = scmp.eq.s32.totalorder %s30, 0
      %s33 = sadd.s32 %s32, 1
      %s34 = scalar_select %p31, %s32, %s33
      %p37 = pneg %p31
      %p38 = scmp.eq.s32.totalorder %s22, 7
      %p39 = por %p37, %p38
      %p40 = scmp.ne.s32.totalorder %s32, %s35
      %p41 = scmp.eq.s32.totalorder %s22, 0
      %p42 = por %p40, %p41
      %p43 = scmp.ne.s32.totalorder %s32, %s35
      %p44 = scmp.eq.s32.totalorder %s27, 7
      %p45 = por %p43, %p44
      %p46 = scmp.ne.s32.totalorder %s35, %s36
      %p47 = scmp.eq.s32.totalorder %s27, 0
      %p48 = por %p46, %p47
      %p49 = scmp.ne.s32.totalorder %s35, %s36
      %p50 = scmp.eq.s32.totalorder %s28, 7
      %p51 = por %p49, %p50
      %p53 = scmp.ne.s32.totalorder %s36, %s52
      %p54 = scmp.eq.s32.totalorder %s28, 0
      %p55 = por %p53, %p54
      %s56 = ssub.s32 %s22, %s29
      %p57 = scmp.eq.s32.totalorder %s56, 0
      %s59 = sadd.s32 %s58, 1
      %s60 = scalar_select %p57, %s58, %s59
      %p63 = pneg %p57
      %p64 = scmp.eq.s32.totalorder %s22, 7
      %p65 = por %p63, %p64
      %p66 = scmp.ne.s32.totalorder %s58, %s61
      %p67 = scmp.eq.s32.totalorder %s22, 0
      %p68 = por %p66, %p67
      %p69 = scmp.ne.s32.totalorder %s58, %s61
      %p70 = scmp.eq.s32.totalorder %s27, 7
      %p71 = por %p69, %p70
      %p72 = scmp.ne.s32.totalorder %s61, %s62
      %p73 = scmp.eq.s32.totalorder %s27, 0
      %p74 = por %p72, %p73
      %p75 = scmp.ne.s32.totalorder %s61, %s62
      %p76 = scmp.eq.s32.totalorder %s28, 7
      %p77 = por %p75, %p76
      %p79 = scmp.ne.s32.totalorder %s62, %s78
      %p80 = scmp.eq.s32.totalorder %s28, 0
      %p81 = por %p79, %p80
      %s82 = ssub.s32 %s22, %s29
      %p83 = scmp.eq.s32.totalorder %s82, 0
      %s85 = sadd.s32 %s84, 1
      %s86 = scalar_select %p83, %s84, %s85
      %p89 = pneg %p83
      %p90 = scmp.eq.s32.totalorder %s22, 7
      %p91 = por %p89, %p90
      %p92 = scmp.ne.s32.totalorder %s84, %s87
      %p93 = scmp.eq.s32.totalorder %s22, 0
      %p94 = por %p92, %p93
      %p95 = scmp.ne.s32.totalorder %s84, %s87
      %p96 = scmp.eq.s32.totalorder %s27, 7
      %p97 = por %p95, %p96
      %p98 = scmp.ne.s32.totalorder %s87, %s88
      %p99 = scmp.eq.s32.totalorder %s27, 0
      %p100 = por %p98, %p99
      %p101 = scmp.ne.s32.totalorder %s87, %s88
      %p102 = scmp.eq.s32.totalorder %s28, 7
      %p103 = por %p101, %p102
      %p105 = scmp.ne.s32.totalorder %s88, %s104
      %p106 = scmp.eq.s32.totalorder %s28, 0
      %p107 = por %p105, %p106
      %s108 = ssub.s32 %s22, %s29
      %p109 = scmp.eq.s32.totalorder %s108, 0
      %s111 = sadd.s32 %s110, 1
      %s112 = scalar_select %p109, %s110, %s111
      %p115 = pneg %p109
      %p116 = scmp.eq.s32.totalorder %s22, 7
      %p117 = por %p115, %p116
      %p118 = scmp.ne.s32.totalorder %s110, %s113
      %p119 = scmp.eq.s32.totalorder %s22, 0
      %p120 = por %p118, %p119
      %p121 = scmp.ne.s32.totalorder %s110, %s113
      %p122 = scmp.eq.s32.totalorder %s27, 7
      %p123 = por %p121, %p122
      %p124 = scmp.ne.s32.totalorder %s113, %s114
      %p125 = scmp.eq.s32.totalorder %s27, 0
      %p126 = por %p124, %p125
      %p127 = scmp.ne.s32.totalorder %s113, %s114
      %p128 = scmp.eq.s32.totalorder %s28, 7
      %p129 = por %p127, %p128
      %p131 = scmp.ne.s32.totalorder %s114, %s130
      %p132 = scmp.eq.s32.totalorder %s28, 0
      %p133 = por %p131, %p132
      %s134 = ssub.s32 %s22, %s29
      %p135 = scmp.eq.s32.totalorder %s134, 0
      %s137 = sadd.s32 %s136, 1
      %s138 = scalar_select %p135, %s136, %s137
      %p141 = pneg %p135
      %p142 = scmp.eq.s32.totalorder %s22, 7
      %p143 = por %p141, %p142
      %p144 = scmp.ne.s32.totalorder %s136, %s139
      %p145 = scmp.eq.s32.totalorder %s22, 0
      %p146 = por %p144, %p145
      %p147 = scmp.ne.s32.totalorder %s136, %s139
      %p148 = scmp.eq.s32.totalorder %s27, 7
      %p149 = por %p147, %p148
      %p150 = scmp.ne.s32.totalorder %s139, %s140
      %p151 = scmp.eq.s32.totalorder %s27, 0
      %p152 = por %p150, %p151
      %p153 = scmp.ne.s32.totalorder %s139, %s140
      %p154 = scmp.eq.s32.totalorder %s28, 7
      %p155 = por %p153, %p154
      %p157 = scmp.ne.s32.totalorder %s140, %s156
      %p158 = scmp.eq.s32.totalorder %s28, 0
      %p159 = por %p157, %p158
      %s161 = sadd.s32 %s160, 1
      %p164 = scmp.eq.s32.totalorder %s22, 7
      %p165 = scmp.ne.s32.totalorder %s160, %s162
      %p166 = scmp.eq.s32.totalorder %s22, 0
      %p167 = por %p165, %p166
      %p168 = scmp.ne.s32.totalorder %s160, %s162
      %p169 = scmp.eq.s32.totalorder %s27, 7
      %p170 = por %p168, %p169
      %p171 = scmp.ne.s32.totalorder %s162, %s163
      %p172 = scmp.eq.s32.totalorder %s27, 0
      %p173 = por %p171, %p172
      %p174 = scmp.ne.s32.totalorder %s162, %s163
      %p175 = scmp.eq.s32.totalorder %s28, 7
      %p176 = por %p174, %p175
      %p178 = scmp.ne.s32.totalorder %s163, %s177
      %p179 = scmp.eq.s32.totalorder %s28, 0
      %p180 = por %p178, %p179
      %s182 = sadd.s32 %s181, 1
      %p185 = scmp.eq.s32.totalorder %s22, 7
      %p186 = scmp.ne.s32.totalorder %s181, %s183
      %p187 = scmp.eq.s32.totalorder %s22, 0
      %p188 = por %p186, %p187
      %p189 = scmp.ne.s32.totalorder %s181, %s183
      %p190 = scmp.eq.s32.totalorder %s27, 7
      %p191 = por %p189, %p190
      %p192 = scmp.ne.s32.totalorder %s183, %s184
      %p193 = scmp.eq.s32.totalorder %s27, 0
      %p194 = por %p192, %p193
      %p195 = scmp.ne.s32.totalorder %s183, %s184
      %p196 = scmp.eq.s32.totalorder %s28, 7
      %p197 = por %p195, %p196
      %p199 = scmp.ne.s32.totalorder %s184, %s198
      %p200 = scmp.eq.s32.totalorder %s28, 0
      %p201 = por %p199, %p200
      %s203 = sadd.s32 %s202, 1
      %p206 = scmp.eq.s32.totalorder %s22, 7
      %p207 = scmp.ne.s32.totalorder %s202, %s204
      %p208 = scmp.eq.s32.totalorder %s22, 0
      %p209 = por %p207, %p208
      %p210 = scmp.ne.s32.totalorder %s202, %s204
      %p211 = scmp.eq.s32.totalorder %s27, 7
      %p212 = por %p210, %p211
      %p213 = scmp.ne.s32.totalorder %s204, %s205
      %p214 = scmp.eq.s32.totalorder %s27, 0
      %p215 = por %p213, %p214
      %p216 = scmp.ne.s32.totalorder %s204, %s205
      %p217 = scmp.eq.s32.totalorder %s28, 7
      %p218 = por %p216, %p217
      %p220 = scmp.ne.s32.totalorder %s205, %s219
      %p221 = scmp.eq.s32.totalorder %s28, 0
      %p222 = por %p220, %p221
      %s224 = sadd.s32 %s223, 1
      %p227 = scmp.eq.s32.totalorder %s22, 7
      %p228 = scmp.ne.s32.totalorder %s223, %s225
      %p229 = scmp.eq.s32.totalorder %s22, 0
      %p230 = por %p228, %p229
      %p231 = scmp.ne.s32.totalorder %s223, %s225
      %p232 = scmp.eq.s32.totalorder %s27, 7
      %p233 = por %p231, %p232
      %p234 = scmp.ne.s32.totalorder %s225, %s226
      %p235 = scmp.eq.s32.totalorder %s27, 0
      %p236 = por %p234, %p235
      %p237 = scmp.ne.s32.totalorder %s225, %s226
      %p238 = scmp.eq.s32.totalorder %s28, 7
      %p239 = por %p237, %p238
      %p241 = scmp.ne.s32.totalorder %s226, %s240
      %p242 = scmp.eq.s32.totalorder %s28, 0
      %p243 = por %p241, %p242
      %s245 = sadd.s32 %s244, 1
      %p248 = scmp.eq.s32.totalorder %s22, 7
      %p249 = scmp.ne.s32.totalorder %s244, %s246
      %p250 = scmp.eq.s32.totalorder %s22, 0
      %p251 = por %p249, %p250
      %p252 = scmp.ne.s32.totalorder %s244, %s246
      %p253 = scmp.eq.s32.totalorder %s27, 7
      %p254 = por %p252, %p253
      %p255 = scmp.ne.s32.totalorder %s246, %s247
      %p256 = scmp.eq.s32.totalorder %s27, 0
      %p257 = por %p255, %p256
      %p258 = scmp.ne.s32.totalorder %s246, %s247
      %p259 = scmp.eq.s32.totalorder %s28, 7
      %p260 = por %p258, %p259
      %p262 = scmp.ne.s32.totalorder %s247, %s261
      %p263 = scmp.eq.s32.totalorder %s28, 0
      %p264 = por %p262, %p263
      %s266 = sadd.s32 %s265, 1
      %p269 = scmp.eq.s32.totalorder %s22, 7
      %p270 = scmp.ne.s32.totalorder %s265, %s267
      %p271 = scmp.eq.s32.totalorder %s22, 0
      %p272 = por %p270, %p271
      %p273 = scmp.ne.s32.totalorder %s265, %s267
      %p274 = scmp.eq.s32.totalorder %s27, 7
      %p275 = por %p273, %p274
      %p276 = scmp.ne.s32.totalorder %s267, %s268
      %p277 = scmp.eq.s32.totalorder %s27, 0
      %p278 = por %p276, %p277
      %p279 = scmp.ne.s32.totalorder %s267, %s268
      %p280 = scmp.eq.s32.totalorder %s28, 7
      %p281 = por %p279, %p280
      %p283 = scmp.ne.s32.totalorder %s268, %s282
      %p284 = scmp.eq.s32.totalorder %s28, 0
      %p285 = por %p283, %p284
      %s287 = sadd.s32 %s286, 1
      %p290 = scmp.eq.s32.totalorder %s22, 7
      %p291 = scmp.ne.s32.totalorder %s286, %s288
      %p292 = scmp.eq.s32.totalorder %s22, 0
      %p293 = por %p291, %p292
      %p294 = scmp.ne.s32.totalorder %s286, %s288
      %p295 = scmp.eq.s32.totalorder %s27, 7
      %p296 = por %p294, %p295
      %p297 = scmp.ne.s32.totalorder %s288, %s289
      %p298 = scmp.eq.s32.totalorder %s27, 0
      %p299 = por %p297, %p298
      %p300 = scmp.ne.s32.totalorder %s288, %s289
      %p301 = scmp.eq.s32.totalorder %s28, 7
      %p302 = por %p300, %p301
      %p304 = scmp.ne.s32.totalorder %s289, %s303
      %p305 = scmp.eq.s32.totalorder %s28, 0
      %p306 = por %p304, %p305
      %s308 = sadd.s32 %s307, 1
      %p311 = scmp.eq.s32.totalorder %s22, 7
      %p312 = scmp.ne.s32.totalorder %s307, %s309
      %p313 = scmp.eq.s32.totalorder %s22, 0
      %p314 = por %p312, %p313
      %p315 = scmp.ne.s32.totalorder %s307, %s309
      %p316 = scmp.eq.s32.totalorder %s27, 7
      %p317 = por %p315, %p316
      %p318 = scmp.ne.s32.totalorder %s309, %s310
      %p319 = scmp.eq.s32.totalorder %s27, 0
      %p320 = por %p318, %p319
      %p321 = scmp.ne.s32.totalorder %s309, %s310
      %p322 = scmp.eq.s32.totalorder %s28, 7
      %p323 = por %p321, %p322
      %p325 = scmp.ne.s32.totalorder %s310, %s324
      %p326 = scmp.eq.s32.totalorder %s28, 0
      %p327 = por %p325, %p326
      %s328 = ssub.s32 %s22, %s29
      %p329 = scmp.eq.s32.totalorder %s328, 0
      %s331 = sadd.s32 %s330, 1
      %s332 = scalar_select %p329, %s330, %s331
      %p335 = pneg %p329
      %p336 = scmp.eq.s32.totalorder %s22, 7
      %p337 = por %p335, %p336
      %p338 = scmp.ne.s32.totalorder %s330, %s333
      %p339 = scmp.eq.s32.totalorder %s22, 0
      %p340 = por %p338, %p339
      %p341 = scmp.ne.s32.totalorder %s330, %s333
      %p342 = scmp.eq.s32.totalorder %s27, 7
      %p343 = por %p341, %p342
      %p344 = scmp.ne.s32.totalorder %s333, %s334
      %p345 = scmp.eq.s32.totalorder %s27, 0
      %p346 = por %p344, %p345
      %p347 = scmp.ne.s32.totalorder %s333, %s334
      %p348 = scmp.eq.s32.totalorder %s28, 7
      %p349 = por %p347, %p348
      %p351 = scmp.ne.s32.totalorder %s334, %s350
      %p352 = scmp.eq.s32.totalorder %s28, 0
      %p353 = por %p351, %p352
      %p354 = scmp.le.s32.totalorder 1, %s22
      %p355 = scmp.lt.s32.totalorder %s22, 9
      %p356 = pnand %p354, %p355
      %p357 = pneg %p356
      // Predicated region
      $region9: #{tpu_custom_call.1} parent=5 // pred_check
        _
      $region10: #{tpu_custom_call.1} parent=5 // pred_check_branch
        %359 = sbr.rel (%p356) target = $region12
      $region11: #{tpu_custom_call.1} parent=5 // pred_region
        %s360 = ssub.s32 %s22, 1
        // Predicated region
        $region13: #{tpu_custom_call.1} parent=11 // pred_check
          %p361 = pneg %p173
        $region14: #{tpu_custom_call.1} parent=11 // pred_check_branch
          %363 = sbr.rel (%p361) target = $region16
        $region15: #{tpu_custom_call.1} parent=11 // pred_region
          _
        $region16: #{tpu_custom_call.1} parent=11 // pred_fallthru
          _
        // Predicated region
        $region17: #{tpu_custom_call.1} parent=11 // pred_check
          %p364 = pneg %p194
        $region18: #{tpu_custom_call.1} parent=11 // pred_check_branch
          %366 = sbr.rel (%p364) target = $region20
        $region19: #{tpu_custom_call.1} parent=11 // pred_region
          _
        $region20: #{tpu_custom_call.1} parent=11 // pred_fallthru
          _
        // Predicated region
        $region21: #{tpu_custom_call.1} parent=11 // pred_check
          %p367 = pneg %p215
        $region22: #{tpu_custom_call.1} parent=11 // pred_check_branch
          %369 = sbr.rel (%p367) target = $region24
        $region23: #{tpu_custom_call.1} parent=11 // pred_region
          _
        $region24: #{tpu_custom_call.1} parent=11 // pred_fallthru
          _
        // Predicated region
        $region25: #{tpu_custom_call.1} parent=11 // pred_check
          %p370 = pneg %p236
        $region26: #{tpu_custom_call.1} parent=11 // pred_check_branch
          %372 = sbr.rel (%p370) target = $region28
        $region27: #{tpu_custom_call.1} parent=11 // pred_region
          _
        $region28: #{tpu_custom_call.1} parent=11 // pred_fallthru
          _
        // Predicated region
        $region29: #{tpu_custom_call.1} parent=11 // pred_check
          %p373 = pneg %p257
        $region30: #{tpu_custom_call.1} parent=11 // pred_check_branch
          %375 = sbr.rel (%p373) target = $region32
        $region31: #{tpu_custom_call.1} parent=11 // pred_region
          _
        $region32: #{tpu_custom_call.1} parent=11 // pred_fallthru
          _
        // Predicated region
        $region33: #{tpu_custom_call.1} parent=11 // pred_check
          %p376 = pneg %p278
        $region34: #{tpu_custom_call.1} parent=11 // pred_check_branch
          %378 = sbr.rel (%p376) target = $region36
        $region35: #{tpu_custom_call.1} parent=11 // pred_region
          _
        $region36: #{tpu_custom_call.1} parent=11 // pred_fallthru
          _
        // Predicated region
        $region37: #{tpu_custom_call.1} parent=11 // pred_check
          %p379 = pneg %p299
        $region38: #{tpu_custom_call.1} parent=11 // pred_check_branch
          %381 = sbr.rel (%p379) target = $region40
        $region39: #{tpu_custom_call.1} parent=11 // pred_region
          _
        $region40: #{tpu_custom_call.1} parent=11 // pred_fallthru
          _
        // Predicated region
        $region41: #{tpu_custom_call.1} parent=11 // pred_check
          %p382 = pneg %p320
        $region42: #{tpu_custom_call.1} parent=11 // pred_check_branch
          %384 = sbr.rel (%p382) target = $region44
        $region43: #{tpu_custom_call.1} parent=11 // pred_region
          _
        $region44: #{tpu_custom_call.1} parent=11 // pred_fallthru
          _
      $region12: #{tpu_custom_call.1} parent=5 // pred_fallthru
        _
      %p385 = scmp.lt.s32.totalorder %s22, 8
      // Predicated region
      $region45: #{tpu_custom_call.1} parent=5 // pred_check
        %p386 = pneg %p385
      $region46: #{tpu_custom_call.1} parent=5 // pred_check_branch
        %388 = sbr.rel (%p386) target = $region48
      $region47: #{tpu_custom_call.1} parent=5 // pred_region
        // Predicated region
        $region49: #{tpu_custom_call.1} parent=47 // pred_check
          %p389 = pneg %p42
        $region50: #{tpu_custom_call.1} parent=47 // pred_check_branch
          %391 = sbr.rel (%p389) target = $region52
        $region51: #{tpu_custom_call.1} parent=47 // pred_region
          %p392 = scmp.lt.s32.totalorder %s22, 7
          %s393 = scalar_select %p392, %s22, 7
          %s394 = smul.addr %s393, 4
          %s395 = scalar_lea.vmem %s0, %s394
        $region52: #{tpu_custom_call.1} parent=47 // pred_fallthru
          _
        // Predicated region
        $region53: #{tpu_custom_call.1} parent=47 // pred_check
          %p396 = pneg %p68
        $region54: #{tpu_custom_call.1} parent=47 // pred_check_branch
          %398 = sbr.rel (%p396) target = $region56
        $region55: #{tpu_custom_call.1} parent=47 // pred_region
          %s399 = smul.u32 8, %s22
          %p400 = scmp.lt.s32.totalorder %s399, 63
          %s401 = scalar_select %p400, %s399, 63
          %s402 = smul.addr %s401, 4
          %s403 = scalar_lea.vmem %s1, %s402
          %s404 = smul.u32 8, %s22
        $region56: #{tpu_custom_call.1} parent=47 // pred_fallthru
          _
        // Predicated region
        $region57: #{tpu_custom_call.1} parent=47 // pred_check
          %p405 = pneg %p94
        $region58: #{tpu_custom_call.1} parent=47 // pred_check_branch
          %407 = sbr.rel (%p405) target = $region60
        $region59: #{tpu_custom_call.1} parent=47 // pred_region
          %p408 = scmp.lt.s32.totalorder %s22, 7
          %s409 = scalar_select %p408, %s22, 7
          %s410 = smul.addr %s409, 8
          %s411 = scalar_lea.vmem %s2, %s410
        $region60: #{tpu_custom_call.1} parent=47 // pred_fallthru
          _
        // Predicated region
        $region61: #{tpu_custom_call.1} parent=47 // pred_check
          %p412 = pneg %p120
        $region62: #{tpu_custom_call.1} parent=47 // pred_check_branch
          %414 = sbr.rel (%p412) target = $region64
        $region63: #{tpu_custom_call.1} parent=47 // pred_region
          %s415 = smul.u32 8, %s22
          %p416 = scmp.lt.s32.totalorder %s415, 63
          %s417 = scalar_select %p416, %s415, 63
          %s418 = smul.addr %s417, 4
          %s419 = scalar_lea.vmem %s3, %s418
          %s420 = smul.u32 8, %s22
        $region64: #{tpu_custom_call.1} parent=47 // pred_fallthru
          _
        // Predicated region
        $region65: #{tpu_custom_call.1} parent=47 // pred_check
          %p421 = pneg %p146
        $region66: #{tpu_custom_call.1} parent=47 // pred_check_branch
          %423 = sbr.rel (%p421) target = $region68
        $region67: #{tpu_custom_call.1} parent=47 // pred_region
          %p424 = scmp.lt.s32.totalorder %s22, 7
          %s425 = scalar_select %p424, %s22, 7
          %s426 = smul.addr %s425, 8
          %s427 = scalar_lea.vmem %s4, %s426
        $region68: #{tpu_custom_call.1} parent=47 // pred_fallthru
          _
      $region48: #{tpu_custom_call.1} parent=5 // pred_fallthru
        _
      %p428 = scmp.le.s32.totalorder 1, %s22
      %p429 = scmp.lt.s32.totalorder %s22, 9
      %p430 = pnand %p428, %p429
      %p431 = pneg %p430
      // Predicated region
      $region69: #{tpu_custom_call.1} parent=5 // pred_check
        _
      $region70: #{tpu_custom_call.1} parent=5 // pred_check_branch
        %433 = sbr.rel (%p430) target = $region72
      $region71: #{tpu_custom_call.1} parent=5 // pred_region
        %s434 = ssub.s32 %s22, 1
        %p435 = scmp.lt.s32.totalorder %s27, 7
        %s436 = scalar_select %p435, %s27, 7
        %s437 = smul.addr %s436, 4
        %s438 = scalar_lea.vmem %s0, %s437
        %p439 = pneg %p48
        %p440 = pneg %p45
        %s441 = smul.u32 8, %s27
        %p442 = scmp.lt.s32.totalorder %s441, 63
        %s443 = scalar_select %p442, %s441, 63
        %s444 = smul.addr %s443, 4
        %s445 = scalar_lea.vmem %s1, %s444
        %p446 = pneg %p74
        %p447 = pneg %p71
        %p448 = scmp.lt.s32.totalorder %s27, 7
        %s449 = scalar_select %p448, %s27, 7
        %s450 = smul.addr %s449, 8
        %s451 = scalar_lea.vmem %s2, %s450
        %p452 = pneg %p100
        %p453 = pneg %p97
        %s454 = smul.u32 8, %s27
        %p455 = scmp.lt.s32.totalorder %s454, 63
        %s456 = scalar_select %p455, %s454, 63
        %s457 = smul.addr %s456, 4
        %s458 = scalar_lea.vmem %s3, %s457
        %p459 = pneg %p126
        %p460 = pneg %p123
        %p461 = scmp.lt.s32.totalorder %s27, 7
        %s462 = scalar_select %p461, %s27, 7
        %s463 = smul.addr %s462, 8
        %s464 = scalar_lea.vmem %s4, %s463
        %p465 = pneg %p152
        %p466 = pneg %p149
        %p467 = pneg %p173
        %p468 = pneg %p170
        %p469 = pneg %p194
        %p470 = pneg %p191
        %p471 = pneg %p215
        %p472 = pneg %p212
        %p473 = pneg %p236
        %p474 = pneg %p233
        %p475 = pneg %p257
        %p476 = pneg %p254
        %p477 = pneg %p278
        %p478 = pneg %p275
        %p479 = pneg %p299
        %p480 = pneg %p296
        %p481 = pneg %p320
        %p482 = pneg %p317
        %p483 = pneg %p346
        %p484 = pneg %p343
        %s485 = sand.u32 %s333, 1
        %s486 = scalar_lea.sflag [#allocation3], %s485
        %s487 = sand.u32 %s333, 1
        %s488 = smul.addr %s487, 4
        %s489 = scalar_lea.vmem [#allocation2], %s488
        %p490 = scmp.lt.s32.totalorder %s27, 7
        %s491 = scalar_select %p490, %s27, 7
        %s492 = smul.addr %s491, 4
        %s493 = scalar_lea.vmem %s0, %s492
        %s494 = smul.u32 8, %s27
        %p495 = scmp.lt.s32.totalorder %s494, 63
        %s496 = scalar_select %p495, %s494, 63
        %s497 = smul.addr %s496, 4
        %s498 = scalar_lea.vmem %s1, %s497
        %s499 = smul.u32 8, %s27
        %p500 = scmp.lt.s32.totalorder %s27, 7
        %s501 = scalar_select %p500, %s27, 7
        %s502 = smul.addr %s501, 8
        %s503 = scalar_lea.vmem %s2, %s502
        %s504 = smul.u32 8, %s27
        %p505 = scmp.lt.s32.totalorder %s504, 63
        %s506 = scalar_select %p505, %s504, 63
        %s507 = smul.addr %s506, 4
        %s508 = scalar_lea.vmem %s3, %s507
        %s509 = smul.u32 8, %s27
        %p510 = scmp.lt.s32.totalorder %s27, 7
        %s511 = scalar_select %p510, %s27, 7
        %s512 = smul.addr %s511, 8
        %s513 = scalar_lea.vmem %s4, %s512
        %v515 = vld [vmem:[%s493] sm:$0xf]
        %v516 = vld [vmem:[%s498] sm:$0xf]
        %v517 = vld [vmem:[%s498 + $0x4] sm:$0xf]
        %v518 = vld [vmem:[%s498 + $0x8] sm:$0xf]
        %v519 = vld [vmem:[%s498 + $0xc] sm:$0xf]
        %v520 = vld [vmem:[%s498 + $0x10] sm:$0xf]
        %v521 = vld [vmem:[%s498 + $0x14] sm:$0xf]
        %v522 = vld [vmem:[%s498 + $0x18] sm:$0xf]
        %v523 = vld [vmem:[%s498 + $0x1c] sm:$0xf]
        %v524 = vld [vmem:[%s503] sm:$0xff]
        %v525 = vld [vmem:[%s508] sm:$0xf]
        %v526 = vld [vmem:[%s508 + $0x4] sm:$0xf]
        %v527 = vld [vmem:[%s508 + $0x8] sm:$0xf]
        %v528 = vld [vmem:[%s508 + $0xc] sm:$0xf]
        %v529 = vld [vmem:[%s508 + $0x10] sm:$0xf]
        %v530 = vld [vmem:[%s508 + $0x14] sm:$0xf]
        %v531 = vld [vmem:[%s508 + $0x18] sm:$0xf]
        %v532 = vld [vmem:[%s508 + $0x1c] sm:$0xf]
        %v533 = vld [vmem:[%s513] sm:$0xff]
        %v534 = vld [vmem:[%s5] sm:$0xf]
        %v535 = vld [vmem:[%s5 + $0x4] sm:$0xf]
        %v536 = vld [vmem:[%s5 + $0x8] sm:$0xf]
        %v537 = vld [vmem:[%s5 + $0xc] sm:$0xf]
        %v538 = vld [vmem:[%s6] sm:$0x1]
        %v539 = vld [vmem:[%s7] sm:$0xff]
        %v540 = vld [vmem:[%s7 + $0x8] sm:$0xff]
        %v541 = vld [vmem:[%s7 + $0x10] sm:$0xff]
        %v542 = vld [vmem:[%s7 + $0x18] sm:$0xff]
        %v543 = vld [vmem:[%s7 + $0x20] sm:$0xff]
        %v544 = vld [vmem:[%s7 + $0x28] sm:$0xff]
        %v545 = vld [vmem:[%s7 + $0x30] sm:$0xff]
        %v546 = vld [vmem:[%s7 + $0x38] sm:$0xff]
        %v547 = vld [vmem:[%s8] sm:$0x3]
        %v548 = vld [vmem:[%s9] sm:$0xf]
        %v549 = vld [vmem:[%s9 + $0x4] sm:$0xf]
        %v550 = vld [vmem:[%s9 + $0x8] sm:$0xf]
        %v551 = vld [vmem:[%s9 + $0xc] sm:$0xf]
        %v552 = vld [vmem:[%s9 + $0x10] sm:$0xf]
        %v553 = vld [vmem:[%s9 + $0x14] sm:$0xf]
        %v554 = vld [vmem:[%s9 + $0x18] sm:$0xf]
        %v555 = vld [vmem:[%s9 + $0x1c] sm:$0xf]
        %v556 = vld [vmem:[%s9 + $0x20] sm:$0xf]
        %v557 = vld [vmem:[%s9 + $0x24] sm:$0xf]
        %v558 = vld [vmem:[%s9 + $0x28] sm:$0xf]
        %v559 = vld [vmem:[%s9 + $0x2c] sm:$0xf]
        %v560 = vld [vmem:[%s9 + $0x30] sm:$0xf]
        %v561 = vld [vmem:[%s9 + $0x34] sm:$0xf]
        %v562 = vld [vmem:[%s9 + $0x38] sm:$0xf]
        %v563 = vld [vmem:[%s9 + $0x3c] sm:$0xf]
        %v564 = vld [vmem:[%s9 + $0x40] sm:$0xf]
        %v565 = vld [vmem:[%s9 + $0x44] sm:$0xf]
        %v566 = vld [vmem:[%s9 + $0x48] sm:$0xf]
        %v567 = vld [vmem:[%s9 + $0x4c] sm:$0xf]
        %v568 = vld [vmem:[%s9 + $0x50] sm:$0xf]
        %v569 = vld [vmem:[%s9 + $0x54] sm:$0xf]
        %v570 = vld [vmem:[%s9 + $0x58] sm:$0xf]
        %v571 = vld [vmem:[%s9 + $0x5c] sm:$0xf]
        %v572 = vld [vmem:[%s9 + $0x60] sm:$0xf]
        %v573 = vld [vmem:[%s9 + $0x64] sm:$0xf]
        %v574 = vld [vmem:[%s9 + $0x68] sm:$0xf]
        %v575 = vld [vmem:[%s9 + $0x6c] sm:$0xf]
        %v576 = vld [vmem:[%s9 + $0x70] sm:$0xf]
        %v577 = vld [vmem:[%s9 + $0x74] sm:$0xf]
        %v578 = vld [vmem:[%s9 + $0x78] sm:$0xf]
        %v579 = vld [vmem:[%s9 + $0x7c] sm:$0xf]
        %v580 = vld [vmem:[%s10] sm:$0x1]
        %v581 = vld [vmem:[%s11] sm:$0xf]
        %v582 = vld [vmem:[%s11 + $0x4] sm:$0xf]
        %v583 = vld [vmem:[%s11 + $0x8] sm:$0xf]
        %v584 = vld [vmem:[%s11 + $0xc] sm:$0xf]
        %v585 = vld [vmem:[%s11 + $0x10] sm:$0xf]
        %v586 = vld [vmem:[%s11 + $0x14] sm:$0xf]
        %v587 = vld [vmem:[%s11 + $0x18] sm:$0xf]
        %v588 = vld [vmem:[%s11 + $0x1c] sm:$0xf]
        %v589 = vld [vmem:[%s11 + $0x20] sm:$0xf]
        %v590 = vld [vmem:[%s11 + $0x24] sm:$0xf]
        %v591 = vld [vmem:[%s11 + $0x28] sm:$0xf]
        %v592 = vld [vmem:[%s11 + $0x2c] sm:$0xf]
        %v593 = vld [vmem:[%s11 + $0x30] sm:$0xf]
        %v594 = vld [vmem:[%s11 + $0x34] sm:$0xf]
        %v595 = vld [vmem:[%s11 + $0x38] sm:$0xf]
        %v596 = vld [vmem:[%s11 + $0x3c] sm:$0xf]
        %v597 = vld [vmem:[%s12] sm:$0x1]
        %v599 = vlaneseq
        %v600 = vshrl.u32 %v599, 7
        %v601 = vsub.s32 0, %v600
        %v602 = vrot.slane %v538, %v601
        %v608 = vunpack.c.l.b16 %v534
        %v609 = vunpack.c.l.b16 %v535
        %v610 = vunpack.c.l.b16 %v536
        %v611 = vunpack.c.l.b16 %v537
        %v612 = vpack.c.b16 %v609, %v608
        %v613 = vpack.c.b16 %v611, %v610
        %vm616 = vcmask 261120
        %v618 = vsel %vm616, %v515, 0
        %620 = vmatprep.subr.bf16.mxu0 0
        %621 = vmatpush1.bf16.msra.mxu0 0
        %622 = vmatprep.subr.bf16.mxu0 0
        %623 = vmatpush1.bf16.msra.mxu0 0
        %624 = vmatprep.subr.bf16.mxu0 0
        %625 = vmatpush1.bf16.msra.mxu0 0
        %626 = vmatprep.subr.bf16.mxu0 0
        %627 = vmatpush1.bf16.msra.mxu0 0
        %628 = vmatprep.subr.bf16.mxu0 0
        %629 = vmatpush1.bf16.msra.mxu0 0
        %630 = vmatprep.subr.bf16.mxu0 0
        %631 = vmatpush1.bf16.msra.mxu0 0
        %632 = vmatprep.subr.bf16.mxu0 0
        %633 = vmatpush1.bf16.msra.mxu0 %v613
        %634 = vmatprep.subr.bf16.mxu0 0
        %635 = vmatpush1.bf16.msra.mxu0 %v612
        %636 = vmatprep.subr.bf16.mxu0 0
        %637 = vmatpush2.bf16.msra.mxu0 0
        %638 = vmatprep.subr.bf16.mxu0 0
        %639 = vmatpush2.bf16.msra.mxu0 0
        %640 = vmatprep.subr.bf16.mxu0 0
        %641 = vmatpush2.bf16.msra.mxu0 0
        %642 = vmatprep.subr.bf16.mxu0 0
        %643 = vmatpush2.bf16.msra.mxu0 0
        %644 = vmatprep.subr.bf16.mxu0 0
        %645 = vmatpush2.bf16.msra.mxu0 0
        %646 = vmatprep.subr.bf16.mxu0 0
        %647 = vmatpush2.bf16.msra.mxu0 0
        %648 = vmatprep.subr.bf16.mxu0 0
        %649 = vmatpush2.bf16.msra.mxu0 0
        %650 = vmatprep.subr.bf16.mxu0 0
        %651 = vmatpush2.bf16.msra.mxu0 0
        %652 = vmatprep.mubr.bf16.mxu0 0
        %653 = vmatmul.mubr.bf16.gmra.mxu0 %v618
        %v654 = vpop.f32.mrf.mxu0
        %v655 = vadd.f32 %v602, %v654
        %v656 = vpop.f32.mrf.mxu0
        %v657 = vpop.f32.mrf.mxu0
        %v658 = vpop.f32.mrf.mxu0
        %659 = vdwg.mxu0
        %v660 = vunpack.c.l.bf16 %v516
        %v661 = vunpack.c.l.bf16 %v517
        %v662 = vunpack.c.l.bf16 %v518
        %v663 = vunpack.c.l.bf16 %v519
        %v664 = vunpack.c.l.bf16 %v520
        %v665 = vunpack.c.l.bf16 %v521
        %v666 = vunpack.c.l.bf16 %v522
        %v667 = vunpack.c.l.bf16 %v523
        %v669 = vcombine.high %v655, %v655
        %v671 = vunpack.c.l.s4 1966171168
        %v672 = vunpack.c.0.s8 %v671
        %v673 = vlaneseq
        %v674 = vshrl.u32 %v673, 7
        %v675 = vsub.s32 %v672, %v674
        %v676 = vrot.slane %v655, %v675
        %v678 = vunpack.c.l.s4 1966171168
        %v679 = vunpack.c.0.s8 %v678
        %v680 = vlaneseq
        %v681 = vshrl.u32 %v680, 7
        %v682 = vsub.s32 %v679, %v681
        %v683 = vrot.slane %v669, %v682
        %v684 = vcombine.high %v676, %v676
        %v685 = vcombine.high %v683, %v683
        %v687 = vunpack.c.l.s4 1966171168
        %v688 = vunpack.c.0.s8 %v687
        %v689 = vlaneseq
        %v690 = vshrl.u32 %v689, 7
        %v691 = vsub.s32 %v688, %v690
        %v692 = vrot.slane %v676, %v691
        %v694 = vunpack.c.l.s4 1966171168
        %v695 = vunpack.c.0.s8 %v694
        %v696 = vlaneseq
        %v697 = vshrl.u32 %v696, 7
        %v698 = vsub.s32 %v695, %v697
        %v699 = vrot.slane %v683, %v698
        %v701 = vunpack.c.l.s4 1966171168
        %v702 = vunpack.c.0.s8 %v701
        %v703 = vlaneseq
        %v704 = vshrl.u32 %v703, 7
        %v705 = vsub.s32 %v702, %v704
        %v706 = vrot.slane %v684, %v705
        %v708 = vunpack.c.l.s4 1966171168
        %v709 = vunpack.c.0.s8 %v708
        %v710 = vlaneseq
        %v711 = vshrl.u32 %v710, 7
        %v712 = vsub.s32 %v709, %v711
        %v713 = vrot.slane %v685, %v712
        %v714 = vcombine.high %v692, %v692
        %v715 = vcombine.high %v699, %v699
        %v716 = vcombine.high %v706, %v706
        %v717 = vcombine.high %v713, %v713
        %v718 = vlaneseq
        %v719 = vshrl.u32 %v718, 7
        %v720 = vsub.s32 0, %v719
        %v721 = vrot.slane %v692, %v720
        %v722 = vlaneseq
        %v723 = vshrl.u32 %v722, 7
        %v724 = vsub.s32 0, %v723
        %v725 = vrot.slane %v706, %v724
        %v726 = vlaneseq
        %v727 = vshrl.u32 %v726, 7
        %v728 = vsub.s32 0, %v727
        %v729 = vrot.slane %v714, %v728
        %v730 = vlaneseq
        %v731 = vshrl.u32 %v730, 7
        %v732 = vsub.s32 0, %v731
        %v733 = vrot.slane %v716, %v732
        %v734 = vlaneseq
        %v735 = vshrl.u32 %v734, 7
        %v736 = vsub.s32 0, %v735
        %v737 = vrot.slane %v699, %v736
        %v738 = vlaneseq
        %v739 = vshrl.u32 %v738, 7
        %v740 = vsub.s32 0, %v739
        %v741 = vrot.slane %v713, %v740
        %v742 = vlaneseq
        %v743 = vshrl.u32 %v742, 7
        %v744 = vsub.s32 0, %v743
        %v745 = vrot.slane %v715, %v744
        %v746 = vlaneseq
        %v747 = vshrl.u32 %v746, 7
        %v748 = vsub.s32 0, %v747
        %v749 = vrot.slane %v717, %v748
        %v758 = vmul.f32 %v721, %v660
        %v759 = vmul.f32 %v725, %v661
        %v760 = vmul.f32 %v729, %v662
        %v761 = vmul.f32 %v733, %v663
        %v762 = vmul.f32 %v737, %v664
        %v763 = vmul.f32 %v741, %v665
        %v764 = vmul.f32 %v745, %v666
        %v765 = vmul.f32 %v749, %v667
        %v766 = vsel %vm616, %v758, 0.0
        %767 = vadd.xlane.f32.xlu0 %v766
        %v768 = vpop.xlane.xlu0 %767
        %v769 = vsel %vm616, %v759, 0.0
        %770 = vadd.xlane.f32.xlu0 %v769
        %v771 = vpop.xlane.xlu0 %770
        %v772 = vsel %vm616, %v760, 0.0
        %773 = vadd.xlane.f32.xlu0 %v772
        %v774 = vpop.xlane.xlu0 %773
        %v775 = vsel %vm616, %v761, 0.0
        %776 = vadd.xlane.f32.xlu0 %v775
        %v777 = vpop.xlane.xlu0 %776
        %v778 = vsel %vm616, %v762, 0.0
        %779 = vadd.xlane.f32.xlu0 %v778
        %v780 = vpop.xlane.xlu0 %779
        %v781 = vsel %vm616, %v763, 0.0
        %782 = vadd.xlane.f32.xlu0 %v781
        %v783 = vpop.xlane.xlu0 %782
        %v784 = vsel %vm616, %v764, 0.0
        %785 = vadd.xlane.f32.xlu0 %v784
        %v786 = vpop.xlane.xlu0 %785
        %v787 = vsel %vm616, %v765, 0.0
        %788 = vadd.xlane.f32.xlu0 %v787
        %v789 = vpop.xlane.xlu0 %788
        %v790 = vlaneseq
        %v791 = vand.u32 %v790, 127
        %792 = vset.pattern.permute.xlu0 0
        %793 = vperm.xlu0 %792, %v524
        %v794 = vpop.permute.xlu0 %793
        %vm795 = vcmp.lt.s32.totalorder %v791, %v794
        %v804 = vlaneseq
        %v805 = vshrl.u32 %v804, 7
        %v806 = vsub.s32 %v791, %v805
        %v807 = vrot.slane %v768, %v806
        %v808 = vlaneseq
        %v809 = vshrl.u32 %v808, 7
        %v810 = vsub.s32 %v791, %v809
        %v811 = vrot.slane %v771, %v810
        %v812 = vlaneseq
        %v813 = vshrl.u32 %v812, 7
        %v814 = vsub.s32 %v791, %v813
        %v815 = vrot.slane %v774, %v814
        %v816 = vlaneseq
        %v817 = vshrl.u32 %v816, 7
        %v818 = vsub.s32 %v791, %v817
        %v819 = vrot.slane %v777, %v818
        %v820 = vlaneseq
        %v821 = vshrl.u32 %v820, 7
        %v822 = vsub.s32 %v791, %v821
        %v823 = vrot.slane %v780, %v822
        %v824 = vlaneseq
        %v825 = vshrl.u32 %v824, 7
        %v826 = vsub.s32 %v791, %v825
        %v827 = vrot.slane %v783, %v826
        %v828 = vlaneseq
        %v829 = vshrl.u32 %v828, 7
        %v830 = vsub.s32 %v791, %v829
        %v831 = vrot.slane %v786, %v830
        %v832 = vlaneseq
        %v833 = vshrl.u32 %v832, 7
        %v834 = vsub.s32 %v791, %v833
        %v835 = vrot.slane %v789, %v834
        %vm836 = vcmask 1041409
        %v837 = vsel %vm836, %v811, %v807
        %vm838 = vcmask 1042434
        %v839 = vsel %vm838, %v815, %v837
        %vm840 = vcmask 1043459
        %v841 = vsel %vm840, %v819, %v839
        %vm842 = vcmask 1044484
        %v843 = vsel %vm842, %v823, %v841
        %vm844 = vcmask 1045509
        %v845 = vsel %vm844, %v827, %v843
        %vm846 = vcmask 1046534
        %v847 = vsel %vm846, %v831, %v845
        %vm848 = vcmask 1047559
        %v849 = vsel %vm848, %v835, %v847
        %v851 = vsel %vm795, %v849, -1e+09
        %vm852 = vcmask 64512
        %v853 = vsel %vm852, %v851, -inf
        %854 = vmax.xlane.f32.xlu0 %v853
        %v855 = vpop.xlane.xlu0 %854
        %v856 = vsub.f32 %v851, %v855
        %v857 = vmul.f32 %v856, 1.442695
        %v858 = vpow.pop %v857
        %v859 = vsel %vm795, %v858, 0.0
        %v860 = vsel %vm852, %v859, 0.0
        %861 = vadd.xlane.f32.xlu0 %v860
        %v862 = vpop.xlane.xlu0 %861
        %vm863 = vcmp.gt.s32.totalorder %v524, 0
        %v864 = vsel %vm863, %v862, 1.0
        %v865 = vrcp.pop %v864
        %867 = vset.pattern.permute.xlu0 0
        %868 = vperm.xlu0 %867, %v865
        %v869 = vpop.permute.xlu0 %868
        %v871 = vmul.f32 %v859, %v869
        %v872 = vlaneseq
        %v873 = vshrl.u32 %v872, 7
        %v874 = vsub.s32 0, %v873
        %v875 = vrot.slane %v871, %v874
        %877 = vbcast.lane.b32.xlu0 %v875, 256
        %v878 = vpop.permute.xlu0 %877
        %v879 = vlaneseq
        %v880 = vshrl.u32 %v879, 7
        %v881 = vsub.s32 1, %v880
        %v882 = vrot.slane %v871, %v881
        %884 = vbcast.lane.b32.xlu0 %v882, 256
        %v885 = vpop.permute.xlu0 %884
        %v886 = vlaneseq
        %v887 = vshrl.u32 %v886, 7
        %v888 = vsub.s32 2, %v887
        %v889 = vrot.slane %v871, %v888
        %891 = vbcast.lane.b32.xlu0 %v889, 256
        %v892 = vpop.permute.xlu0 %891
        %v893 = vlaneseq
        %v894 = vshrl.u32 %v893, 7
        %v895 = vsub.s32 3, %v894
        %v896 = vrot.slane %v871, %v895
        %898 = vbcast.lane.b32.xlu0 %v896, 256
        %v899 = vpop.permute.xlu0 %898
        %v900 = vlaneseq
        %v901 = vshrl.u32 %v900, 7
        %v902 = vsub.s32 4, %v901
        %v903 = vrot.slane %v871, %v902
        %905 = vbcast.lane.b32.xlu0 %v903, 256
        %v906 = vpop.permute.xlu0 %905
        %v907 = vlaneseq
        %v908 = vshrl.u32 %v907, 7
        %v909 = vsub.s32 5, %v908
        %v910 = vrot.slane %v871, %v909
        %912 = vbcast.lane.b32.xlu0 %v910, 256
        %v913 = vpop.permute.xlu0 %912
        %v914 = vlaneseq
        %v915 = vshrl.u32 %v914, 7
        %v916 = vsub.s32 6, %v915
        %v917 = vrot.slane %v871, %v916
        %919 = vbcast.lane.b32.xlu0 %v917, 256
        %v920 = vpop.permute.xlu0 %919
        %v921 = vlaneseq
        %v922 = vshrl.u32 %v921, 7
        %v923 = vsub.s32 7, %v922
        %v924 = vrot.slane %v871, %v923
        %926 = vbcast.lane.b32.xlu0 %v924, 256
        %v927 = vpop.permute.xlu0 %926
        %v928 = vmul.f32 %v878, %v660
        %v929 = vmul.f32 %v885, %v661
        %v930 = vmul.f32 %v892, %v662
        %v931 = vmul.f32 %v899, %v663
        %v932 = vmul.f32 %v906, %v664
        %v933 = vmul.f32 %v913, %v665
        %v934 = vmul.f32 %v920, %v666
        %v935 = vmul.f32 %v927, %v667
        %v936 = vsel %vm616, %v928, 0.0
        %v937 = vrot.slane %v936, 4
        %v938 = vadd.f32 %v936, %v937
        %v939 = vrot.slane %v938, 2
        %v940 = vadd.f32 %v938, %v939
        %v941 = vrot.slane %v940, 1
        %v942 = vadd.f32 %v940, %v941
        %v943 = vsel %vm616, %v929, 0.0
        %v944 = vrot.slane %v943, 4
        %v945 = vadd.f32 %v943, %v944
        %v946 = vrot.slane %v945, 2
        %v947 = vadd.f32 %v945, %v946
        %v948 = vrot.slane %v947, 1
        %v949 = vadd.f32 %v947, %v948
        %v950 = vsel %vm616, %v930, 0.0
        %v951 = vrot.slane %v950, 4
        %v952 = vadd.f32 %v950, %v951
        %v953 = vrot.slane %v952, 2
        %v954 = vadd.f32 %v952, %v953
        %v955 = vrot.slane %v954, 1
        %v956 = vadd.f32 %v954, %v955
        %v957 = vsel %vm616, %v931, 0.0
        %v958 = vrot.slane %v957, 4
        %v959 = vadd.f32 %v957, %v958
        %v960 = vrot.slane %v959, 2
        %v961 = vadd.f32 %v959, %v960
        %v962 = vrot.slane %v961, 1
        %v963 = vadd.f32 %v961, %v962
        %v964 = vsel %vm616, %v932, 0.0
        %v965 = vrot.slane %v964, 4
        %v966 = vadd.f32 %v964, %v965
        %v967 = vrot.slane %v966, 2
        %v968 = vadd.f32 %v966, %v967
        %v969 = vrot.slane %v968, 1
        %v970 = vadd.f32 %v968, %v969
        %v971 = vsel %vm616, %v933, 0.0
        %v972 = vrot.slane %v971, 4
        %v973 = vadd.f32 %v971, %v972
        %v974 = vrot.slane %v973, 2
        %v975 = vadd.f32 %v973, %v974
        %v976 = vrot.slane %v975, 1
        %v977 = vadd.f32 %v975, %v976
        %v978 = vsel %vm616, %v934, 0.0
        %v979 = vrot.slane %v978, 4
        %v980 = vadd.f32 %v978, %v979
        %v981 = vrot.slane %v980, 2
        %v982 = vadd.f32 %v980, %v981
        %v983 = vrot.slane %v982, 1
        %v984 = vadd.f32 %v982, %v983
        %v985 = vsel %vm616, %v935, 0.0
        %v986 = vrot.slane %v985, 4
        %v987 = vadd.f32 %v985, %v986
        %v988 = vrot.slane %v987, 2
        %v989 = vadd.f32 %v987, %v988
        %v990 = vrot.slane %v989, 1
        %v991 = vadd.f32 %v989, %v990
        %v992 = vunpack.c.l.bf16 %v525
        %v993 = vunpack.c.l.bf16 %v526
        %v994 = vunpack.c.l.bf16 %v527
        %v995 = vunpack.c.l.bf16 %v528
        %v996 = vunpack.c.l.bf16 %v529
        %v997 = vunpack.c.l.bf16 %v530
        %v998 = vunpack.c.l.bf16 %v531
        %v999 = vunpack.c.l.bf16 %v532
        %1008 = vrot.lane.b32.xlu0 %v992, 32
        %v1009 = vpop.permute.xlu0 %1008
        %1010 = vrot.lane.b32.xlu0 %v993, 32
        %v1011 = vpop.permute.xlu0 %1010
        %1012 = vrot.lane.b32.xlu0 %v994, 32
        %v1013 = vpop.permute.xlu0 %1012
        %1014 = vrot.lane.b32.xlu0 %v995, 32
        %v1015 = vpop.permute.xlu0 %1014
        %1016 = vrot.lane.b32.xlu0 %v996, 32
        %v1017 = vpop.permute.xlu0 %1016
        %1018 = vrot.lane.b32.xlu0 %v997, 32
        %v1019 = vpop.permute.xlu0 %1018
        %1020 = vrot.lane.b32.xlu0 %v998, 32
        %v1021 = vpop.permute.xlu0 %1020
        %1022 = vrot.lane.b32.xlu0 %v999, 32
        %v1023 = vpop.permute.xlu0 %1022
        %v1032 = vmul.f32 %v721, %v1009
        %v1033 = vmul.f32 %v725, %v1011
        %v1034 = vmul.f32 %v729, %v1013
        %v1035 = vmul.f32 %v733, %v1015
        %v1036 = vmul.f32 %v737, %v1017
        %v1037 = vmul.f32 %v741, %v1019
        %v1038 = vmul.f32 %v745, %v1021
        %v1039 = vmul.f32 %v749, %v1023
        %1048 = vrot.lane.b32.xlu0 %v1032, 96
        %v1049 = vpop.permute.xlu0 %1048
        %1050 = vrot.lane.b32.xlu0 %v1033, 96
        %v1051 = vpop.permute.xlu0 %1050
        %1052 = vrot.lane.b32.xlu0 %v1034, 96
        %v1053 = vpop.permute.xlu0 %1052
        %1054 = vrot.lane.b32.xlu0 %v1035, 96
        %v1055 = vpop.permute.xlu0 %1054
        %1056 = vrot.lane.b32.xlu0 %v1036, 96
        %v1057 = vpop.permute.xlu0 %1056
        %1058 = vrot.lane.b32.xlu0 %v1037, 96
        %v1059 = vpop.permute.xlu0 %1058
        %1060 = vrot.lane.b32.xlu0 %v1038, 96
        %v1061 = vpop.permute.xlu0 %1060
        %1062 = vrot.lane.b32.xlu0 %v1039, 96
        %v1063 = vpop.permute.xlu0 %1062
        %v1072 = vsel %vm616, %v1049, 0.0
        %1073 = vadd.xlane.f32.xlu0 %v1072
        %v1074 = vpop.xlane.xlu0 %1073
        %v1075 = vsel %vm616, %v1051, 0.0
        %1076 = vadd.xlane.f32.xlu0 %v1075
        %v1077 = vpop.xlane.xlu0 %1076
        %v1078 = vsel %vm616, %v1053, 0.0
        %1079 = vadd.xlane.f32.xlu0 %v1078
        %v1080 = vpop.xlane.xlu0 %1079
        %v1081 = vsel %vm616, %v1055, 0.0
        %1082 = vadd.xlane.f32.xlu0 %v1081
        %v1083 = vpop.xlane.xlu0 %1082
        %v1084 = vsel %vm616, %v1057, 0.0
        %1085 = vadd.xlane.f32.xlu0 %v1084
        %v1086 = vpop.xlane.xlu0 %1085
        %v1087 = vsel %vm616, %v1059, 0.0
        %1088 = vadd.xlane.f32.xlu0 %v1087
        %v1089 = vpop.xlane.xlu0 %1088
        %v1090 = vsel %vm616, %v1061, 0.0
        %1091 = vadd.xlane.f32.xlu0 %v1090
        %v1092 = vpop.xlane.xlu0 %1091
        %v1093 = vsel %vm616, %v1063, 0.0
        %1094 = vadd.xlane.f32.xlu0 %v1093
        %v1095 = vpop.xlane.xlu0 %1094
        %1096 = vset.pattern.permute.xlu0 0
        %1097 = vperm.xlu0 %1096, %v533
        %v1098 = vpop.permute.xlu0 %1097
        %vm1099 = vcmp.lt.s32.totalorder %v791, %v1098
        %v1108 = vlaneseq
        %v1109 = vshrl.u32 %v1108, 7
        %v1110 = vsub.s32 %v791, %v1109
        %v1111 = vrot.slane %v1074, %v1110
        %v1112 = vlaneseq
        %v1113 = vshrl.u32 %v1112, 7
        %v1114 = vsub.s32 %v791, %v1113
        %v1115 = vrot.slane %v1077, %v1114
        %v1116 = vlaneseq
        %v1117 = vshrl.u32 %v1116, 7
        %v1118 = vsub.s32 %v791, %v1117
        %v1119 = vrot.slane %v1080, %v1118
        %v1120 = vlaneseq
        %v1121 = vshrl.u32 %v1120, 7
        %v1122 = vsub.s32 %v791, %v1121
        %v1123 = vrot.slane %v1083, %v1122
        %v1124 = vlaneseq
        %v1125 = vshrl.u32 %v1124, 7
        %v1126 = vsub.s32 %v791, %v1125
        %v1127 = vrot.slane %v1086, %v1126
        %v1128 = vlaneseq
        %v1129 = vshrl.u32 %v1128, 7
        %v1130 = vsub.s32 %v791, %v1129
        %v1131 = vrot.slane %v1089, %v1130
        %v1132 = vlaneseq
        %v1133 = vshrl.u32 %v1132, 7
        %v1134 = vsub.s32 %v791, %v1133
        %v1135 = vrot.slane %v1092, %v1134
        %v1136 = vlaneseq
        %v1137 = vshrl.u32 %v1136, 7
        %v1138 = vsub.s32 %v791, %v1137
        %v1139 = vrot.slane %v1095, %v1138
        %v1140 = vsel %vm836, %v1115, %v1111
        %v1141 = vsel %vm838, %v1119, %v1140
        %v1142 = vsel %vm840, %v1123, %v1141
        %v1143 = vsel %vm842, %v1127, %v1142
        %v1144 = vsel %vm844, %v1131, %v1143
        %v1145 = vsel %vm846, %v1135, %v1144
        %v1146 = vsel %vm848, %v1139, %v1145
        %v1148 = vsel %vm1099, %v1146, -1e+09
        %v1149 = vsel %vm852, %v1148, -inf
        %1150 = vmax.xlane.f32.xlu0 %v1149
        %v1151 = vpop.xlane.xlu0 %1150
        %v1152 = vsub.f32 %v1148, %v1151
        %v1153 = vmul.f32 %v1152, 1.442695
        %v1154 = vpow.pop %v1153
        %v1155 = vsel %vm1099, %v1154, 0.0
        %v1156 = vsel %vm852, %v1155, 0.0
        %1157 = vadd.xlane.f32.xlu0 %v1156
        %v1158 = vpop.xlane.xlu0 %1157
        %vm1159 = vcmp.gt.s32.totalorder %v533, 0
        %v1160 = vsel %vm1159, %v1158, 1.0
        %v1161 = vrcp.pop %v1160
        %1163 = vset.pattern.permute.xlu0 0
        %1164 = vperm.xlu0 %1163, %v1161
        %v1165 = vpop.permute.xlu0 %1164
        %v1167 = vmul.f32 %v1155, %v1165
        %v1168 = vlaneseq
        %v1169 = vshrl.u32 %v1168, 7
        %v1170 = vsub.s32 0, %v1169
        %v1171 = vrot.slane %v1167, %v1170
        %1173 = vbcast.lane.b32.xlu0 %v1171, 256
        %v1174 = vpop.permute.xlu0 %1173
        %v1175 = vlaneseq
        %v1176 = vshrl.u32 %v1175, 7
        %v1177 = vsub.s32 1, %v1176
        %v1178 = vrot.slane %v1167, %v1177
        %1180 = vbcast.lane.b32.xlu0 %v1178, 256
        %v1181 = vpop.permute.xlu0 %1180
        %v1182 = vlaneseq
        %v1183 = vshrl.u32 %v1182, 7
        %v1184 = vsub.s32 2, %v1183
        %v1185 = vrot.slane %v1167, %v1184
        %1187 = vbcast.lane.b32.xlu0 %v1185, 256
        %v1188 = vpop.permute.xlu0 %1187
        %v1189 = vlaneseq
        %v1190 = vshrl.u32 %v1189, 7
        %v1191 = vsub.s32 3, %v1190
        %v1192 = vrot.slane %v1167, %v1191
        %1194 = vbcast.lane.b32.xlu0 %v1192, 256
        %v1195 = vpop.permute.xlu0 %1194
        %v1196 = vlaneseq
        %v1197 = vshrl.u32 %v1196, 7
        %v1198 = vsub.s32 4, %v1197
        %v1199 = vrot.slane %v1167, %v1198
        %1201 = vbcast.lane.b32.xlu0 %v1199, 256
        %v1202 = vpop.permute.xlu0 %1201
        %v1203 = vlaneseq
        %v1204 = vshrl.u32 %v1203, 7
        %v1205 = vsub.s32 5, %v1204
        %v1206 = vrot.slane %v1167, %v1205
        %1208 = vbcast.lane.b32.xlu0 %v1206, 256
        %v1209 = vpop.permute.xlu0 %1208
        %v1210 = vlaneseq
        %v1211 = vshrl.u32 %v1210, 7
        %v1212 = vsub.s32 6, %v1211
        %v1213 = vrot.slane %v1167, %v1212
        %1215 = vbcast.lane.b32.xlu0 %v1213, 256
        %v1216 = vpop.permute.xlu0 %1215
        %v1217 = vlaneseq
        %v1218 = vshrl.u32 %v1217, 7
        %v1219 = vsub.s32 7, %v1218
        %v1220 = vrot.slane %v1167, %v1219
        %1222 = vbcast.lane.b32.xlu0 %v1220, 256
        %v1223 = vpop.permute.xlu0 %1222
        %v1224 = vmul.f32 %v1174, %v992
        %v1225 = vmul.f32 %v1181, %v993
        %v1226 = vmul.f32 %v1188, %v994
        %v1227 = vmul.f32 %v1195, %v995
        %v1228 = vmul.f32 %v1202, %v996
        %v1229 = vmul.f32 %v1209, %v997
        %v1230 = vmul.f32 %v1216, %v998
        %v1231 = vmul.f32 %v1223, %v999
        %v1232 = vsel %vm616, %v1224, 0.0
        %v1233 = vrot.slane %v1232, 4
        %v1234 = vadd.f32 %v1232, %v1233
        %v1235 = vrot.slane %v1234, 2
        %v1236 = vadd.f32 %v1234, %v1235
        %v1237 = vrot.slane %v1236, 1
        %v1238 = vadd.f32 %v1236, %v1237
        %v1239 = vsel %vm616, %v1225, 0.0
        %v1240 = vrot.slane %v1239, 4
        %v1241 = vadd.f32 %v1239, %v1240
        %v1242 = vrot.slane %v1241, 2
        %v1243 = vadd.f32 %v1241, %v1242
        %v1244 = vrot.slane %v1243, 1
        %v1245 = vadd.f32 %v1243, %v1244
        %v1246 = vsel %vm616, %v1226, 0.0
        %v1247 = vrot.slane %v1246, 4
        %v1248 = vadd.f32 %v1246, %v1247
        %v1249 = vrot.slane %v1248, 2
        %v1250 = vadd.f32 %v1248, %v1249
        %v1251 = vrot.slane %v1250, 1
        %v1252 = vadd.f32 %v1250, %v1251
        %v1253 = vsel %vm616, %v1227, 0.0
        %v1254 = vrot.slane %v1253, 4
        %v1255 = vadd.f32 %v1253, %v1254
        %v1256 = vrot.slane %v1255, 2
        %v1257 = vadd.f32 %v1255, %v1256
        %v1258 = vrot.slane %v1257, 1
        %v1259 = vadd.f32 %v1257, %v1258
        %v1260 = vsel %vm616, %v1228, 0.0
        %v1261 = vrot.slane %v1260, 4
        %v1262 = vadd.f32 %v1260, %v1261
        %v1263 = vrot.slane %v1262, 2
        %v1264 = vadd.f32 %v1262, %v1263
        %v1265 = vrot.slane %v1264, 1
        %v1266 = vadd.f32 %v1264, %v1265
        %v1267 = vsel %vm616, %v1229, 0.0
        %v1268 = vrot.slane %v1267, 4
        %v1269 = vadd.f32 %v1267, %v1268
        %v1270 = vrot.slane %v1269, 2
        %v1271 = vadd.f32 %v1269, %v1270
        %v1272 = vrot.slane %v1271, 1
        %v1273 = vadd.f32 %v1271, %v1272
        %v1274 = vsel %vm616, %v1230, 0.0
        %v1275 = vrot.slane %v1274, 4
        %v1276 = vadd.f32 %v1274, %v1275
        %v1277 = vrot.slane %v1276, 2
        %v1278 = vadd.f32 %v1276, %v1277
        %v1279 = vrot.slane %v1278, 1
        %v1280 = vadd.f32 %v1278, %v1279
        %v1281 = vsel %vm616, %v1231, 0.0
        %v1282 = vrot.slane %v1281, 4
        %v1283 = vadd.f32 %v1281, %v1282
        %v1284 = vrot.slane %v1283, 2
        %v1285 = vadd.f32 %v1283, %v1284
        %v1286 = vrot.slane %v1285, 1
        %v1287 = vadd.f32 %v1285, %v1286
        %v1296 = vsel %vm836, %v949, %v942
        %v1297 = vsel %vm838, %v956, %v1296
        %v1298 = vsel %vm840, %v963, %v1297
        %v1299 = vsel %vm842, %v970, %v1298
        %v1300 = vsel %vm844, %v977, %v1299
        %v1301 = vsel %vm846, %v984, %v1300
        %v1302 = vsel %vm848, %v991, %v1301
        %v1312 = vsel %vm836, %v1245, %v1238
        %v1313 = vsel %vm838, %v1252, %v1312
        %v1314 = vsel %vm840, %v1259, %v1313
        %v1315 = vsel %vm842, %v1266, %v1314
        %v1316 = vsel %vm844, %v1273, %v1315
        %v1317 = vsel %vm846, %v1280, %v1316
        %v1318 = vsel %vm848, %v1287, %v1317
        %1319 = vrot.lane.b32.xlu0 %v1318, 32
        %v1320 = vpop.permute.xlu0 %1319
        %v1322 = vsel %vm616, %v1302, %v1320
        %v1323 = vpack.c.bf16 %v1322, %v1322
        %v1325 = vlaneseq
        %v1326 = vshrl.u32 %v1325, 7
        %v1327 = vsub.s32 0, %v1326
        %v1328 = vrot.slane %v547, %v1327
        %v1329 = vlaneseq
        %v1330 = vshrl.u32 %v1329, 7
        %v1331 = vsub.s32 1, %v1330
        %v1332 = vrot.slane %v547, %v1331
        %v1343 = vunpack.c.l.b16 %v539
        %v1344 = vunpack.c.h.b16 %v539
        %v1345 = vunpack.c.l.b16 %v540
        %v1346 = vunpack.c.h.b16 %v540
        %v1347 = vunpack.c.l.b16 %v541
        %v1348 = vunpack.c.h.b16 %v541
        %v1349 = vunpack.c.l.b16 %v542
        %v1350 = vunpack.c.h.b16 %v542
        %v1351 = vunpack.c.l.b16 %v543
        %v1352 = vunpack.c.h.b16 %v543
        %v1353 = vunpack.c.l.b16 %v544
        %v1354 = vunpack.c.h.b16 %v544
        %v1355 = vunpack.c.l.b16 %v545
        %v1356 = vunpack.c.h.b16 %v545
        %v1357 = vunpack.c.l.b16 %v546
        %v1358 = vunpack.c.h.b16 %v546
        %v1359 = vpack.c.b16 %v1345, %v1343
        %v1360 = vpack.c.b16 %v1346, %v1344
        %v1361 = vpack.c.b16 %v1349, %v1347
        %v1362 = vpack.c.b16 %v1350, %v1348
        %v1363 = vpack.c.b16 %v1353, %v1351
        %v1364 = vpack.c.b16 %v1354, %v1352
        %v1365 = vpack.c.b16 %v1357, %v1355
        %v1366 = vpack.c.b16 %v1358, %v1356
        %vm1375 = vcmask 523264
        %v1377 = vsel %vm1375, %v1323, 0
        %1379 = vmatprep.subr.bf16.mxu0 0
        %1380 = vmatpush1.bf16.msra.mxu0 0
        %1381 = vmatprep.subr.bf16.mxu0 0
        %1382 = vmatpush1.bf16.msra.mxu0 0
        %1383 = vmatprep.subr.bf16.mxu0 0
        %1384 = vmatpush1.bf16.msra.mxu0 0
        %1385 = vmatprep.subr.bf16.mxu0 0
        %1386 = vmatpush1.bf16.msra.mxu0 0
        %1387 = vmatprep.subr.bf16.mxu0 %v1366
        %1388 = vmatpush1.bf16.msra.mxu0 %v1365
        %1389 = vmatprep.subr.bf16.mxu0 %v1364
        %1390 = vmatpush1.bf16.msra.mxu0 %v1363
        %1391 = vmatprep.subr.bf16.mxu0 %v1362
        %1392 = vmatpush1.bf16.msra.mxu0 %v1361
        %1393 = vmatprep.subr.bf16.mxu0 %v1360
        %1394 = vmatpush1.bf16.msra.mxu0 %v1359
        %1395 = vmatprep.subr.bf16.mxu0 0
        %1396 = vmatpush2.bf16.msra.mxu0 0
        %1397 = vmatprep.subr.bf16.mxu0 0
        %1398 = vmatpush2.bf16.msra.mxu0 0
        %1399 = vmatprep.subr.bf16.mxu0 0
        %1400 = vmatpush2.bf16.msra.mxu0 0
        %1401 = vmatprep.subr.bf16.mxu0 0
        %1402 = vmatpush2.bf16.msra.mxu0 0
        %1403 = vmatprep.subr.bf16.mxu0 0
        %1404 = vmatpush2.bf16.msra.mxu0 0
        %1405 = vmatprep.subr.bf16.mxu0 0
        %1406 = vmatpush2.bf16.msra.mxu0 0
        %1407 = vmatprep.subr.bf16.mxu0 0
        %1408 = vmatpush2.bf16.msra.mxu0 0
        %1409 = vmatprep.subr.bf16.mxu0 0
        %1410 = vmatpush2.bf16.msra.mxu0 0
        %1411 = vmatprep.mubr.bf16.mxu0 0
        %1412 = vmatmul.mubr.bf16.gmra.mxu0 %v1377
        %v1413 = vpop.f32.mrf.mxu0
        %v1414 = vadd.f32 %v1328, %v1413
        %v1415 = vpop.f32.mrf.mxu0
        %v1416 = vadd.f32 %v1332, %v1415
        %v1417 = vpop.f32.mrf.mxu0
        %v1418 = vpop.f32.mrf.mxu0
        %1419 = vdwg.mxu0
        %v1420 = vmax.f32 %v1414, 0.0
        %v1421 = vmax.f32 %v1416, 0.0
        %v1422 = vpack.c.bf16 %v1420, %v1420
        %v1423 = vpack.c.bf16 %v1421, %v1421
        %v1425 = vlaneseq
        %v1426 = vshrl.u32 %v1425, 7
        %v1427 = vsub.s32 0, %v1426
        %v1428 = vrot.slane %v580, %v1427
        %v1462 = vunpack.c.l.b16 %v548
        %v1463 = vunpack.c.l.b16 %v549
        %v1464 = vunpack.c.l.b16 %v550
        %v1465 = vunpack.c.l.b16 %v551
        %v1466 = vunpack.c.l.b16 %v552
        %v1467 = vunpack.c.l.b16 %v553
        %v1468 = vunpack.c.l.b16 %v554
        %v1469 = vunpack.c.l.b16 %v555
        %v1470 = vunpack.c.l.b16 %v556
        %v1471 = vunpack.c.l.b16 %v557
        %v1472 = vunpack.c.l.b16 %v558
        %v1473 = vunpack.c.l.b16 %v559
        %v1474 = vunpack.c.l.b16 %v560
        %v1475 = vunpack.c.l.b16 %v561
        %v1476 = vunpack.c.l.b16 %v562
        %v1477 = vunpack.c.l.b16 %v563
        %v1478 = vunpack.c.l.b16 %v564
        %v1479 = vunpack.c.l.b16 %v565
        %v1480 = vunpack.c.l.b16 %v566
        %v1481 = vunpack.c.l.b16 %v567
        %v1482 = vunpack.c.l.b16 %v568
        %v1483 = vunpack.c.l.b16 %v569
        %v1484 = vunpack.c.l.b16 %v570
        %v1485 = vunpack.c.l.b16 %v571
        %v1486 = vunpack.c.l.b16 %v572
        %v1487 = vunpack.c.l.b16 %v573
        %v1488 = vunpack.c.l.b16 %v574
        %v1489 = vunpack.c.l.b16 %v575
        %v1490 = vunpack.c.l.b16 %v576
        %v1491 = vunpack.c.l.b16 %v577
        %v1492 = vunpack.c.l.b16 %v578
        %v1493 = vunpack.c.l.b16 %v579
        %v1494 = vpack.c.b16 %v1463, %v1462
        %v1495 = vpack.c.b16 %v1465, %v1464
        %v1496 = vpack.c.b16 %v1467, %v1466
        %v1497 = vpack.c.b16 %v1469, %v1468
        %v1498 = vpack.c.b16 %v1471, %v1470
        %v1499 = vpack.c.b16 %v1473, %v1472
        %v1500 = vpack.c.b16 %v1475, %v1474
        %v1501 = vpack.c.b16 %v1477, %v1476
        %v1502 = vpack.c.b16 %v1479, %v1478
        %v1503 = vpack.c.b16 %v1481, %v1480
        %v1504 = vpack.c.b16 %v1483, %v1482
        %v1505 = vpack.c.b16 %v1485, %v1484
        %v1506 = vpack.c.b16 %v1487, %v1486
        %v1507 = vpack.c.b16 %v1489, %v1488
        %v1508 = vpack.c.b16 %v1491, %v1490
        %v1509 = vpack.c.b16 %v1493, %v1492
        %1526 = vmatprep.subr.bf16.mxu0 0
        %1527 = vmatpush1.bf16.msra.mxu0 %v1501
        %1528 = vmatprep.subr.bf16.mxu0 0
        %1529 = vmatpush1.bf16.msra.mxu0 %v1500
        %1530 = vmatprep.subr.bf16.mxu0 0
        %1531 = vmatpush1.bf16.msra.mxu0 %v1499
        %1532 = vmatprep.subr.bf16.mxu0 0
        %1533 = vmatpush1.bf16.msra.mxu0 %v1498
        %1534 = vmatprep.subr.bf16.mxu0 0
        %1535 = vmatpush1.bf16.msra.mxu0 %v1497
        %1536 = vmatprep.subr.bf16.mxu0 0
        %1537 = vmatpush1.bf16.msra.mxu0 %v1496
        %1538 = vmatprep.subr.bf16.mxu0 0
        %1539 = vmatpush1.bf16.msra.mxu0 %v1495
        %1540 = vmatprep.subr.bf16.mxu0 0
        %1541 = vmatpush1.bf16.msra.mxu0 %v1494
        %1542 = vmatprep.subr.bf16.mxu0 0
        %1543 = vmatpush2.bf16.msra.mxu0 %v1509
        %1544 = vmatprep.subr.bf16.mxu0 0
        %1545 = vmatpush2.bf16.msra.mxu0 %v1508
        %1546 = vmatprep.subr.bf16.mxu0 0
        %1547 = vmatpush2.bf16.msra.mxu0 %v1507
        %1548 = vmatprep.subr.bf16.mxu0 0
        %1549 = vmatpush2.bf16.msra.mxu0 %v1506
        %1550 = vmatprep.subr.bf16.mxu0 0
        %1551 = vmatpush2.bf16.msra.mxu0 %v1505
        %1552 = vmatprep.subr.bf16.mxu0 0
        %1553 = vmatpush2.bf16.msra.mxu0 %v1504
        %1554 = vmatprep.subr.bf16.mxu0 0
        %1555 = vmatpush2.bf16.msra.mxu0 %v1503
        %1556 = vmatprep.subr.bf16.mxu0 0
        %1557 = vmatpush2.bf16.msra.mxu0 %v1502
        %1558 = vmatprep.mubr.bf16.mxu0 %v1423
        %1559 = vmatmul.mubr.bf16.gmra.mxu0 %v1422
        %v1560 = vpop.f32.mrf.mxu0
        %v1561 = vadd.f32 %v1428, %v1560
        %v1562 = vpop.f32.mrf.mxu0
        %v1563 = vpop.f32.mrf.mxu0
        %v1564 = vpop.f32.mrf.mxu0
        %1565 = vdwg.mxu0
        %v1566 = vmax.f32 %v1561, 0.0
        %v1567 = vpack.c.bf16 %v1566, %v1566
        %v1569 = vlaneseq
        %v1570 = vshrl.u32 %v1569, 7
        %v1571 = vsub.s32 0, %v1570
        %v1572 = vrot.slane %v597, %v1571
        %v1590 = vunpack.c.l.b16 %v581
        %v1591 = vunpack.c.l.b16 %v582
        %v1592 = vunpack.c.l.b16 %v583
        %v1593 = vunpack.c.l.b16 %v584
        %v1594 = vunpack.c.l.b16 %v585
        %v1595 = vunpack.c.l.b16 %v586
        %v1596 = vunpack.c.l.b16 %v587
        %v1597 = vunpack.c.l.b16 %v588
        %v1598 = vunpack.c.l.b16 %v589
        %v1599 = vunpack.c.l.b16 %v590
        %v1600 = vunpack.c.l.b16 %v591
        %v1601 = vunpack.c.l.b16 %v592
        %v1602 = vunpack.c.l.b16 %v593
        %v1603 = vunpack.c.l.b16 %v594
        %v1604 = vunpack.c.l.b16 %v595
        %v1605 = vunpack.c.l.b16 %v596
        %v1606 = vpack.c.b16 %v1591, %v1590
        %v1607 = vpack.c.b16 %v1593, %v1592
        %v1608 = vpack.c.b16 %v1595, %v1594
        %v1609 = vpack.c.b16 %v1597, %v1596
        %v1610 = vpack.c.b16 %v1599, %v1598
        %v1611 = vpack.c.b16 %v1601, %v1600
        %v1612 = vpack.c.b16 %v1603, %v1602
        %v1613 = vpack.c.b16 %v1605, %v1604
        %1622 = vmatprep.subr.bf16.mxu0 0
        %1623 = vmatpush1.bf16.msra.mxu0 %v1613
        %1624 = vmatprep.subr.bf16.mxu0 0
        %1625 = vmatpush1.bf16.msra.mxu0 %v1612
        %1626 = vmatprep.subr.bf16.mxu0 0
        %1627 = vmatpush1.bf16.msra.mxu0 %v1611
        %1628 = vmatprep.subr.bf16.mxu0 0
        %1629 = vmatpush1.bf16.msra.mxu0 %v1610
        %1630 = vmatprep.subr.bf16.mxu0 0
        %1631 = vmatpush1.bf16.msra.mxu0 %v1609
        %1632 = vmatprep.subr.bf16.mxu0 0
        %1633 = vmatpush1.bf16.msra.mxu0 %v1608
        %1634 = vmatprep.subr.bf16.mxu0 0
        %1635 = vmatpush1.bf16.msra.mxu0 %v1607
        %1636 = vmatprep.subr.bf16.mxu0 0
        %1637 = vmatpush1.bf16.msra.mxu0 %v1606
        %1638 = vmatprep.subr.bf16.mxu0 0
        %1639 = vmatpush2.bf16.msra.mxu0 0
        %1640 = vmatprep.subr.bf16.mxu0 0
        %1641 = vmatpush2.bf16.msra.mxu0 0
        %1642 = vmatprep.subr.bf16.mxu0 0
        %1643 = vmatpush2.bf16.msra.mxu0 0
        %1644 = vmatprep.subr.bf16.mxu0 0
        %1645 = vmatpush2.bf16.msra.mxu0 0
        %1646 = vmatprep.subr.bf16.mxu0 0
        %1647 = vmatpush2.bf16.msra.mxu0 0
        %1648 = vmatprep.subr.bf16.mxu0 0
        %1649 = vmatpush2.bf16.msra.mxu0 0
        %1650 = vmatprep.subr.bf16.mxu0 0
        %1651 = vmatpush2.bf16.msra.mxu0 0
        %1652 = vmatprep.subr.bf16.mxu0 0
        %1653 = vmatpush2.bf16.msra.mxu0 0
        %1654 = vmatprep.mubr.bf16.mxu0 0
        %1655 = vmatmul.mubr.bf16.gmra.mxu0 %v1567
        %v1656 = vpop.f32.mrf.mxu0
        %v1657 = vadd.f32 %v1572, %v1656
        %v1658 = vpop.f32.mrf.mxu0
        %v1659 = vpop.f32.mrf.mxu0
        %v1660 = vpop.f32.mrf.mxu0
        %1661 = vdwg.mxu0
        %v1662 = vpack.c.bf16 %v1657, %v1657
        %1663 = vst [vmem:[%s489] sm:$0xf] %v1662
        %s1664 = sand.u32 %s333, 1
        %s1665 = scalar_lea.sflag [#allocation3], %s1664
        %s1666 = sand.u32 %s333, 1
        %s1667 = smul.addr %s1666, 4
        %s1668 = scalar_lea.vmem [#allocation2], %s1667
        // Predicated region
        $region73: #{tpu_custom_call.1} parent=71 // pred_check
          %p1669 = pneg %p343
        $region74: #{tpu_custom_call.1} parent=71 // pred_check_branch
          %1671 = sbr.rel (%p1669) target = $region76
        $region75: #{tpu_custom_call.1} parent=71 // pred_region
          %s1673 = ssub.s32 64, 64
          %1674 = vsyncadd %s1665, %s1673
          %s1675 = smul.addr %s27, 64
          %s1676 = scalar_lea.hbm %s13, %s1675
          %s1678 = sshll.u32 %s1668, 4
          %s1679 = int_to_ptr.vmem [resolvable:$true] %s1678
          %1681 = dma.vmem_to_hbm [thread:$0]  %s1679, 64, %s1676, %s1665
        $region76: #{tpu_custom_call.1} parent=71 // pred_fallthru
          _
      $region72: #{tpu_custom_call.1} parent=5 // pred_fallthru
        _
      %p1682 = scmp.le.s32.totalorder 2, %s22
      // Predicated region
      $region77: #{tpu_custom_call.1} parent=5 // pred_check
        %p1683 = pneg %p1682
      $region78: #{tpu_custom_call.1} parent=5 // pred_check_branch
        %1685 = sbr.rel (%p1683) target = $region80
      $region79: #{tpu_custom_call.1} parent=5 // pred_region
        %s1686 = ssub.s32 %s22, 2
        // Predicated region
        $region81: #{tpu_custom_call.1} parent=79 // pred_check
          %p1687 = pneg %p349
        $region82: #{tpu_custom_call.1} parent=79 // pred_check_branch
          %1689 = sbr.rel (%p1687) target = $region84
        $region83: #{tpu_custom_call.1} parent=79 // pred_region
          %s1690 = sand.u32 %s334, 1
          %s1691 = scalar_lea.sflag [#allocation3], %s1690
          %s1692 = sand.u32 %s334, 1
          %s1693 = smul.addr %s1692, 4
          %s1694 = scalar_lea.vmem [#allocation2], %s1693
          %1695 = dma.done %s1691, 64
        $region84: #{tpu_custom_call.1} parent=79 // pred_fallthru
          _
      $region80: #{tpu_custom_call.1} parent=5 // pred_fallthru
        _
    $region6: #{tpu_custom_call.1} parent=1 // loop_footer
      %s26 = sadd.s32 1, %s22
    $region7: #{tpu_custom_call.1} parent=1 // loop_footer_branch
      %21 = sbr.rel target = $region3
    $region8: #{tpu_custom_call.1} parent=1 // loop_exit
      _
    %1696 = vsyncpa [#allocation3], 1
    %s1697 = scalar_lea.sflag [#allocation3], 1
    %1698 = vsyncpa %s1697, 1

</llo_original>
